<compile_context>
chip_gen: v7x
topology: tpu7x:2x2x1
jax: 0.10.0
libtpu: 0.0.40
codegen_flags: <defaults>
</compile_context>

<pallas_src>
import functools
import math

import jax
import jax.numpy as jnp
from jax.experimental import pallas as pl
from jax.experimental.pallas import tpu as pltpu


def _fusion_kernel(q_ref, k_ref, v_ref,
                   wq_ref, wk_ref, wv_ref,
                   bq_ref, bk_ref, bv_ref,
                   wof_ref, bof_ref,
                   out_ref, ctx_ref,
                   *, num_heads: int, head_dim: int):
    f32, bf16 = jnp.float32, jnp.bfloat16
    B, L, E = q_ref.shape
    S = k_ref.shape[1]
    D = head_dim

    # Stack the batch block into the MXU M dimension: (B*L, E) rows.
    q2d = q_ref[...].reshape(B * L, E).astype(bf16)
    k2d = k_ref[...].reshape(B * S, E).astype(bf16)
    v2d = v_ref[...].reshape(B * S, E).astype(bf16)

    # Batch-stacked input projections (weights pre-transposed in the wrapper;
    # the 1/sqrt(D) scale is already folded into wq/bq). bf16 MXU, f32 accum.
    qp = jnp.dot(q2d, wq_ref[...], preferred_element_type=f32) + bq_ref[...]
    kp = jnp.dot(k2d, wk_ref[...], preferred_element_type=f32) + bk_ref[...]
    vp = jnp.dot(v2d, wv_ref[...], preferred_element_type=f32) + bv_ref[...]

    # Per-head attention (static loop; num_heads is small).  Each head's
    # context is placed into its column block of the VMEM scratch so the
    # fused out_proj*fc projection runs as a single full-K matmul below.
    for h in range(num_heads):
        lo = h * D
        qh = qp[:, lo:lo + D].reshape(B, L, D).astype(bf16)
        kh = kp[:, lo:lo + D].reshape(B, S, D).astype(bf16)
        vh = vp[:, lo:lo + D].reshape(B, S, D).astype(bf16)

        s = jnp.einsum("bld,bsd->bls", qh, kh, preferred_element_type=f32)
        m = jnp.max(s, axis=-1, keepdims=True)
        p = jnp.exp(s - m)                                           # f32 softmax
        p = p * pl.reciprocal(jnp.sum(p, axis=-1, keepdims=True), approx=True)

        ctx = jnp.einsum("bls,bsd->bld", p.astype(bf16), vh,
                         preferred_element_type=f32)                 # (B, L, D)
        ctx_ref[:, lo:lo + D] = ctx.reshape(B * L, D).astype(bf16)

    # Single fused (out_proj @ fc) projection: (B*L, E) x (E, E), f32 accum.
    fused = jnp.dot(ctx_ref[...], wof_ref[...], preferred_element_type=f32)
    e_kg = jnp.tanh(fused + bof_ref[...])
    # TODO(synk): nn.Dropout (and attention-weight dropout) skipped — identity in eval mode.
    out_ref[...] = e_kg.astype(out_ref.dtype)


def knowledge_level_fusion(Q, K, V, params, *, num_heads: int, b_tile=None):
    """Q: (L, N, E), K/V: (S, N, E) float32 — PyTorch seq-first layout."""
    L, N, E = Q.shape
    S = K.shape[0]
    assert E % num_heads == 0
    H = num_heads
    D = E // H
    f32, bf16 = jnp.float32, jnp.bfloat16

    # layout: torch MultiheadAttention is seq-first (L, N, E); go batch-first.
    q_b = jnp.transpose(Q, (1, 0, 2)).astype(f32)
    k_b = jnp.transpose(K, (1, 0, 2)).astype(f32)
    v_b = jnp.transpose(V, (1, 0, 2)).astype(f32)

    B_TILE = int(min(N, 8)) if b_tile is None else int(b_tile)
    N_pad = ((N + B_TILE - 1) // B_TILE) * B_TILE
    if N_pad != N:
        pad = ((0, N_pad - N), (0, 0), (0, 0))
        q_b, k_b, v_b = (jnp.pad(x, pad) for x in (q_b, k_b, v_b))

    scale = 1.0 / math.sqrt(D)
    wq, wk, wv = params["wq"], params["wk"], params["wv"]      # (E, E) torch Linear layout
    bq, bk, bv = params["bq"], params["bk"], params["bv"]      # (1, E)
    wo, bo = params["wo"], params["bo"]
    wfc, bfc = params["wfc"], params["bfc"]

    # Pre-transpose weights; fold attention scale into the q projection.
    wq_t = (wq * scale).T.astype(bf16)
    bq_s = (bq * scale).astype(f32)
    wk_t = wk.T.astype(bf16)
    wv_t = wv.T.astype(bf16)
    # Exact fusion of out_proj and fc:
    #   (x @ wo.T + bo) @ wfc.T + bfc == x @ (wo.T @ wfc.T) + (bo @ wfc.T + bfc)
    w_of_t = (wo.astype(f32).T @ wfc.astype(f32).T).astype(bf16)     # (E, E)
    b_of = bo.astype(f32) @ wfc.astype(f32).T + bfc.astype(f32)      # (1, E)

    mat_spec = pl.BlockSpec((E, E), lambda b: (0, 0))
    vec_spec = pl.BlockSpec((1, E), lambda b: (0, 0))

    flops = (2 * N_pad * L * E * E + 2 * 2 * N_pad * S * E * E
             + 2 * 2 * N_pad * H * L * S * D + 2 * N_pad * L * E * E)
    transcendentals = N_pad * H * L * S + N_pad * L * E + N_pad * H * L
    bytes_accessed = (4 * (N_pad * L * E + 2 * N_pad * S * E + N_pad * L * E)
                      + 2 * 4 * E * E + 4 * 4 * E)

    kernel = functools.partial(_fusion_kernel, num_heads=H, head_dim=D)

    out2d = pl.pallas_call(
        kernel,
        out_shape=jax.ShapeDtypeStruct((N_pad * L, E), jnp.float32),
        grid_spec=pltpu.PrefetchScalarGridSpec(
            num_scalar_prefetch=0,
            grid=(N_pad // B_TILE,),
            in_specs=[
                pl.BlockSpec((B_TILE, L, E), lambda b: (b, 0, 0)),   # q
                pl.BlockSpec((B_TILE, S, E), lambda b: (b, 0, 0)),   # k
                pl.BlockSpec((B_TILE, S, E), lambda b: (b, 0, 0)),   # v
                mat_spec, mat_spec, mat_spec,                        # wq^T, wk^T, wv^T (bf16)
                vec_spec, vec_spec, vec_spec,                        # bq (scaled), bk, bv (f32)
                mat_spec,                                            # fused (wo.T @ wfc.T) (bf16)
                vec_spec,                                            # fused bias
            ],
            out_specs=pl.BlockSpec((B_TILE * L, E), lambda b: (b, 0)),
            scratch_shapes=[pltpu.VMEM((B_TILE * L, E), jnp.bfloat16)],
        ),
        compiler_params=pltpu.CompilerParams(
            dimension_semantics=("parallel",),
        ),
        cost_estimate=pl.CostEstimate(
            flops=flops, transcendentals=transcendentals,
            bytes_accessed=bytes_accessed),
    )(q_b, k_b, v_b, wq_t, wk_t, wv_t,
      bq_s, bk.astype(f32), bv.astype(f32), w_of_t, b_of)

    out = out2d.reshape(N_pad, L, E)[:N]          # (N, L, E)
    return jnp.transpose(out, (1, 0, 2))          # back to torch seq-first (L, N, E)


def _reference(Q, K, V, params, *, num_heads: int):
    """Pure-JAX f32 reference mirroring torch.nn.MultiheadAttention (eval) + fc + tanh."""
    L, N, E = Q.shape
    D = E // num_heads
    scale = 1.0 / math.sqrt(D)
    qb = jnp.transpose(Q, (1, 0, 2))
    kb = jnp.transpose(K, (1, 0, 2))
    vb = jnp.transpose(V, (1, 0, 2))
    qp = qb @ params["wq"].T + params["bq"]
    kp = kb @ params["wk"].T + params["bk"]
    vp = vb @ params["wv"].T + params["bv"]

    def split(x):  # (N, T, E) -> (N, H, T, D)
        n, t, _ = x.shape
        return jnp.transpose(x.reshape(n, t, num_heads, D), (0, 2, 1, 3))

    qh, kh, vh = split(qp), split(kp), split(vp)
    s = jnp.einsum("nhld,nhsd->nhls", qh, kh) * scale
    p = jax.nn.softmax(s, axis=-1)
    ctx = jnp.einsum("nhls,nhsd->nhld", p, vh)
    ctx = jnp.transpose(ctx, (0, 2, 1, 3)).reshape(N, L, E)
    attn = ctx @ params["wo"].T + params["bo"]
    e_kg = jnp.tanh(attn @ params["wfc"].T + params["bfc"])
    return jnp.transpose(e_kg, (1, 0, 2))


def _init_params(key, hidden_size):
    E = hidden_size
    keys = jax.random.split(key, 8)
    sd = 0.02
    # nn.MultiheadAttention: in_proj_weight (3E, E) split into q/k/v, in_proj_bias (3E,)
    in_proj_w = jax.random.normal(keys[0], (3 * E, E), jnp.float32) * sd
    in_proj_b = jax.random.normal(keys[1], (3 * E,), jnp.float32) * sd
    wq, wk, wv = in_proj_w[:E], in_proj_w[E:2 * E], in_proj_w[2 * E:]
    bq, bk, bv = in_proj_b[:E], in_proj_b[E:2 * E], in_proj_b[2 * E:]
    return {
        "wq": wq, "wk": wk, "wv": wv,
        "bq": bq.reshape(1, E), "bk": bk.reshape(1, E), "bv": bv.reshape(1, E),
        "wo": jax.random.normal(keys[2], (E, E), jnp.float32) * sd,
        "bo": (jax.random.normal(keys[3], (E,), jnp.float32) * sd).reshape(1, E),
        "wfc": jax.random.normal(keys[4], (E, E), jnp.float32) * sd,
        "bfc": (jax.random.normal(keys[5], (E,), jnp.float32) * sd).reshape(1, E),
    }


if __name__ == "__main__":
    # Small shapes consistent with the module: seq-first (L, N, E).
    L, S, N = 8, 8, 2
    hidden_size, num_heads = 64, 8

    key = jax.random.PRNGKey(0)
    kq, kk, kv, kp = jax.random.split(key, 4)
    Q = jax.random.normal(kq, (L, N, hidden_size), jnp.float32)
    K = jax.random.normal(kk, (S, N, hidden_size), jnp.float32)
    V = jax.random.normal(kv, (S, N, hidden_size), jnp.float32)
    params = _init_params(kp, hidden_size)

    out = knowledge_level_fusion(Q, K, V, params, num_heads=num_heads)
    out = jax.block_until_ready(out)

    ref = _reference(Q, K, V, params, num_heads=num_heads)
    assert out.shape == (L, N, hidden_size)
    err = float(jnp.max(jnp.abs(out - ref)))
    # bf16 MXU inputs (f32 accumulation / f32 softmax & tanh) vs. a pure-f32 reference.
    assert err < 1e-3, f"mismatch vs pure-JAX reference: {err}"

    print("KERNEL_OK")
</pallas_src>

<mosaic_0001>
module attributes {stable_mosaic.version = 11 : i64} {
  func.func @_fusion_kernel(%arg0: i32, %arg1: memref<2x8x64xf32, #tpu.memory_space<vmem>>, %arg2: memref<2x8x64xf32, #tpu.memory_space<vmem>>, %arg3: memref<2x8x64xf32, #tpu.memory_space<vmem>>, %arg4: memref<64x64xbf16, #tpu.memory_space<vmem>>, %arg5: memref<64x64xbf16, #tpu.memory_space<vmem>>, %arg6: memref<64x64xbf16, #tpu.memory_space<vmem>>, %arg7: memref<1x64xf32, #tpu.memory_space<vmem>>, %arg8: memref<1x64xf32, #tpu.memory_space<vmem>>, %arg9: memref<1x64xf32, #tpu.memory_space<vmem>>, %arg10: memref<64x64xbf16, #tpu.memory_space<vmem>>, %arg11: memref<1x64xf32, #tpu.memory_space<vmem>>, %arg12: memref<16x64xf32, #tpu.memory_space<vmem>>, %arg13: memref<16x64xbf16, #tpu.memory_space<vmem>>) attributes {dimension_semantics = [#tpu.dimension_semantics<parallel>], iteration_bounds = array<i64: 1>, scalar_prefetch = 0 : i64, scratch_operands = 1 : i64, tpu.core_type = #tpu.core_type<tc>, window_params = [{transform_indices = @transform_0, window_bounds = array<i64: 2, 8, 64>}, {transform_indices = @transform_1, window_bounds = array<i64: 2, 8, 64>}, {transform_indices = @transform_2, window_bounds = array<i64: 2, 8, 64>}, {pipeline_mode = #tpu.pipeline_mode<synchronous>, transform_indices = @transform_3, window_bounds = array<i64: 64, 64>}, {pipeline_mode = #tpu.pipeline_mode<synchronous>, transform_indices = @transform_4, window_bounds = array<i64: 64, 64>}, {pipeline_mode = #tpu.pipeline_mode<synchronous>, transform_indices = @transform_5, window_bounds = array<i64: 64, 64>}, {pipeline_mode = #tpu.pipeline_mode<synchronous>, transform_indices = @transform_6, window_bounds = array<i64: 1, 64>}, {pipeline_mode = #tpu.pipeline_mode<synchronous>, transform_indices = @transform_7, window_bounds = array<i64: 1, 64>}, {pipeline_mode = #tpu.pipeline_mode<synchronous>, transform_indices = @transform_8, window_bounds = array<i64: 1, 64>}, {pipeline_mode = #tpu.pipeline_mode<synchronous>, transform_indices = @transform_9, window_bounds = array<i64: 64, 64>}, {pipeline_mode = #tpu.pipeline_mode<synchronous>, transform_indices = @transform_10, window_bounds = array<i64: 1, 64>}, {transform_indices = @transform_11, window_bounds = array<i64: 16, 64>}]} {
    %c0 = arith.constant 0 : index
    %c0_0 = arith.constant 0 : index
    %c0_1 = arith.constant 0 : index
    %0 = vector.load %arg1[%c0, %c0_0, %c0_1] : memref<2x8x64xf32, #tpu.memory_space<vmem>>, vector<2x8x64xf32>
    %1 = vector.shape_cast %0 : vector<2x8x64xf32> to vector<16x64xf32>
    %2 = arith.truncf %1 : vector<16x64xf32> to vector<16x64xbf16>
    %c0_2 = arith.constant 0 : index
    %c0_3 = arith.constant 0 : index
    %c0_4 = arith.constant 0 : index
    %3 = vector.load %arg2[%c0_2, %c0_3, %c0_4] : memref<2x8x64xf32, #tpu.memory_space<vmem>>, vector<2x8x64xf32>
    %4 = vector.shape_cast %3 : vector<2x8x64xf32> to vector<16x64xf32>
    %5 = arith.truncf %4 : vector<16x64xf32> to vector<16x64xbf16>
    %c0_5 = arith.constant 0 : index
    %c0_6 = arith.constant 0 : index
    %c0_7 = arith.constant 0 : index
    %6 = vector.load %arg3[%c0_5, %c0_6, %c0_7] : memref<2x8x64xf32, #tpu.memory_space<vmem>>, vector<2x8x64xf32>
    %7 = vector.shape_cast %6 : vector<2x8x64xf32> to vector<16x64xf32>
    %8 = arith.truncf %7 : vector<16x64xf32> to vector<16x64xbf16>
    %c0_8 = arith.constant 0 : index
    %c0_9 = arith.constant 0 : index
    %9 = vector.load %arg4[%c0_8, %c0_9] : memref<64x64xbf16, #tpu.memory_space<vmem>>, vector<64x64xbf16>
    %cst = arith.constant dense<0.000000e+00> : vector<16x64xf32>
    %10 = tpu.matmul %2, %9, %cst {dimension_numbers = #tpu.dot_dimension_numbers<[1], [0], [0], [1], [0, 0, 1, 1], [], []>} : vector<16x64xbf16>, vector<64x64xbf16>, vector<16x64xf32> -> vector<16x64xf32>
    %c0_10 = arith.constant 0 : index
    %c0_11 = arith.constant 0 : index
    %11 = vector.load %arg7[%c0_10, %c0_11] : memref<1x64xf32, #tpu.memory_space<vmem>>, vector<1x64xf32>
    %12 = vector.broadcast %11 : vector<1x64xf32> to vector<16x64xf32>
    %13 = arith.addf %10, %12 : vector<16x64xf32>
    %c0_12 = arith.constant 0 : index
    %c0_13 = arith.constant 0 : index
    %14 = vector.load %arg5[%c0_12, %c0_13] : memref<64x64xbf16, #tpu.memory_space<vmem>>, vector<64x64xbf16>
    %cst_14 = arith.constant dense<0.000000e+00> : vector<16x64xf32>
    %15 = tpu.matmul %5, %14, %cst_14 {dimension_numbers = #tpu.dot_dimension_numbers<[1], [0], [0], [1], [0, 0, 1, 1], [], []>} : vector<16x64xbf16>, vector<64x64xbf16>, vector<16x64xf32> -> vector<16x64xf32>
    %c0_15 = arith.constant 0 : index
    %c0_16 = arith.constant 0 : index
    %16 = vector.load %arg8[%c0_15, %c0_16] : memref<1x64xf32, #tpu.memory_space<vmem>>, vector<1x64xf32>
    %17 = vector.broadcast %16 : vector<1x64xf32> to vector<16x64xf32>
    %18 = arith.addf %15, %17 : vector<16x64xf32>
    %c0_17 = arith.constant 0 : index
    %c0_18 = arith.constant 0 : index
    %19 = vector.load %arg6[%c0_17, %c0_18] : memref<64x64xbf16, #tpu.memory_space<vmem>>, vector<64x64xbf16>
    %cst_19 = arith.constant dense<0.000000e+00> : vector<16x64xf32>
    %20 = tpu.matmul %8, %19, %cst_19 {dimension_numbers = #tpu.dot_dimension_numbers<[1], [0], [0], [1], [0, 0, 1, 1], [], []>} : vector<16x64xbf16>, vector<64x64xbf16>, vector<16x64xf32> -> vector<16x64xf32>
    %c0_20 = arith.constant 0 : index
    %c0_21 = arith.constant 0 : index
    %21 = vector.load %arg9[%c0_20, %c0_21] : memref<1x64xf32, #tpu.memory_space<vmem>>, vector<1x64xf32>
    %22 = vector.broadcast %21 : vector<1x64xf32> to vector<16x64xf32>
    %23 = arith.addf %20, %22 : vector<16x64xf32>
    %24 = vector.extract_strided_slice %13 {offsets = [0, 0], sizes = [16, 8], strides = [1, 1]} : vector<16x64xf32> to vector<16x8xf32>
    %25 = vector.shape_cast %24 : vector<16x8xf32> to vector<2x8x8xf32>
    %26 = arith.truncf %25 : vector<2x8x8xf32> to vector<2x8x8xbf16>
    %27 = vector.extract_strided_slice %18 {offsets = [0, 0], sizes = [16, 8], strides = [1, 1]} : vector<16x64xf32> to vector<16x8xf32>
    %28 = vector.shape_cast %27 : vector<16x8xf32> to vector<2x8x8xf32>
    %29 = arith.truncf %28 : vector<2x8x8xf32> to vector<2x8x8xbf16>
    %30 = vector.extract_strided_slice %23 {offsets = [0, 0], sizes = [16, 8], strides = [1, 1]} : vector<16x64xf32> to vector<16x8xf32>
    %31 = vector.shape_cast %30 : vector<16x8xf32> to vector<2x8x8xf32>
    %32 = arith.truncf %31 : vector<2x8x8xf32> to vector<2x8x8xbf16>
    "tpu.trace_start"() <{level = 10 : i32, message = "bld,bsd->bls"}> : () -> ()
    %cst_22 = arith.constant dense<0.000000e+00> : vector<2x8x8xf32>
    %33 = tpu.matmul %26, %29, %cst_22 {dimension_numbers = #tpu.dot_dimension_numbers<[2], [2], [1], [1], [0, 0, 0, 1, 1, 1], [0], [0]>} : vector<2x8x8xbf16>, vector<2x8x8xbf16>, vector<2x8x8xf32> -> vector<2x8x8xf32>
    "tpu.trace_stop"() : () -> ()
    %cst_23 = arith.constant dense<0xFF800000> : vector<2x8xf32>
    %34 = vector.multi_reduction <maximumf>, %33, %cst_23 [2] : vector<2x8x8xf32> to vector<2x8xf32>
    %35 = vector.shape_cast %34 : vector<2x8xf32> to vector<2x8x1xf32>
    %36 = vector.broadcast %35 : vector<2x8x1xf32> to vector<2x8x8xf32>
    %37 = arith.subf %33, %36 : vector<2x8x8xf32>
    %38 = math.exp %37 : vector<2x8x8xf32>
    %cst_24 = arith.constant dense<0.000000e+00> : vector<2x8xf32>
    %39 = vector.multi_reduction <add>, %38, %cst_24 [2] : vector<2x8x8xf32> to vector<2x8xf32>
    %40 = vector.shape_cast %39 : vector<2x8xf32> to vector<2x8x1xf32>
    %41 = tpu.reciprocal %40 {approx = true} : vector<2x8x1xf32> -> vector<2x8x1xf32>
    %42 = vector.broadcast %41 : vector<2x8x1xf32> to vector<2x8x8xf32>
    %43 = arith.mulf %38, %42 : vector<2x8x8xf32>
    %44 = arith.truncf %43 : vector<2x8x8xf32> to vector<2x8x8xbf16>
    "tpu.trace_start"() <{level = 10 : i32, message = "bls,bsd->bld"}> : () -> ()
    %cst_25 = arith.constant dense<0.000000e+00> : vector<2x8x8xf32>
    %45 = tpu.matmul %44, %32, %cst_25 {dimension_numbers = #tpu.dot_dimension_numbers<[2], [1], [1], [2], [0, 0, 0, 1, 1, 2], [0], [0]>} : vector<2x8x8xbf16>, vector<2x8x8xbf16>, vector<2x8x8xf32> -> vector<2x8x8xf32>
    "tpu.trace_stop"() : () -> ()
    %46 = vector.shape_cast %45 : vector<2x8x8xf32> to vector<16x8xf32>
    %47 = arith.truncf %46 : vector<16x8xf32> to vector<16x8xbf16>
    %c0_26 = arith.constant 0 : index
    %c0_27 = arith.constant 0 : index
    %48 = vector.load %arg13[%c0_26, %c0_27] : memref<16x64xbf16, #tpu.memory_space<vmem>>, vector<16x8xbf16>
    tpu.vector_store %arg13[%c0_26, %c0_27], %47 {strides = array<i32>} : memref<16x64xbf16, #tpu.memory_space<vmem>>, vector<16x8xbf16>,
    %49 = vector.extract_strided_slice %13 {offsets = [0, 8], sizes = [16, 8], strides = [1, 1]} : vector<16x64xf32> to vector<16x8xf32>
    %50 = vector.shape_cast %49 : vector<16x8xf32> to vector<2x8x8xf32>
    %51 = arith.truncf %50 : vector<2x8x8xf32> to vector<2x8x8xbf16>
    %52 = vector.extract_strided_slice %18 {offsets = [0, 8], sizes = [16, 8], strides = [1, 1]} : vector<16x64xf32> to vector<16x8xf32>
    %53 = vector.shape_cast %52 : vector<16x8xf32> to vector<2x8x8xf32>
    %54 = arith.truncf %53 : vector<2x8x8xf32> to vector<2x8x8xbf16>
    %55 = vector.extract_strided_slice %23 {offsets = [0, 8], sizes = [16, 8], strides = [1, 1]} : vector<16x64xf32> to vector<16x8xf32>
    %56 = vector.shape_cast %55 : vector<16x8xf32> to vector<2x8x8xf32>
    %57 = arith.truncf %56 : vector<2x8x8xf32> to vector<2x8x8xbf16>
    "tpu.trace_start"() <{level = 10 : i32, message = "bld,bsd->bls"}> : () -> ()
    %cst_28 = arith.constant dense<0.000000e+00> : vector<2x8x8xf32>
    %58 = tpu.matmul %51, %54, %cst_28 {dimension_numbers = #tpu.dot_dimension_numbers<[2], [2], [1], [1], [0, 0, 0, 1, 1, 1], [0], [0]>} : vector<2x8x8xbf16>, vector<2x8x8xbf16>, vector<2x8x8xf32> -> vector<2x8x8xf32>
    "tpu.trace_stop"() : () -> ()
    %cst_29 = arith.constant dense<0xFF800000> : vector<2x8xf32>
    %59 = vector.multi_reduction <maximumf>, %58, %cst_29 [2] : vector<2x8x8xf32> to vector<2x8xf32>
    %60 = vector.shape_cast %59 : vector<2x8xf32> to vector<2x8x1xf32>
    %61 = vector.broadcast %60 : vector<2x8x1xf32> to vector<2x8x8xf32>
    %62 = arith.subf %58, %61 : vector<2x8x8xf32>
    %63 = math.exp %62 : vector<2x8x8xf32>
    %cst_30 = arith.constant dense<0.000000e+00> : vector<2x8xf32>
    %64 = vector.multi_reduction <add>, %63, %cst_30 [2] : vector<2x8x8xf32> to vector<2x8xf32>
    %65 = vector.shape_cast %64 : vector<2x8xf32> to vector<2x8x1xf32>
    %66 = tpu.reciprocal %65 {approx = true} : vector<2x8x1xf32> -> vector<2x8x1xf32>
    %67 = vector.broadcast %66 : vector<2x8x1xf32> to vector<2x8x8xf32>
    %68 = arith.mulf %63, %67 : vector<2x8x8xf32>
    %69 = arith.truncf %68 : vector<2x8x8xf32> to vector<2x8x8xbf16>
    "tpu.trace_start"() <{level = 10 : i32, message = "bls,bsd->bld"}> : () -> ()
    %cst_31 = arith.constant dense<0.000000e+00> : vector<2x8x8xf32>
    %70 = tpu.matmul %69, %57, %cst_31 {dimension_numbers = #tpu.dot_dimension_numbers<[2], [1], [1], [2], [0, 0, 0, 1, 1, 2], [0], [0]>} : vector<2x8x8xbf16>, vector<2x8x8xbf16>, vector<2x8x8xf32> -> vector<2x8x8xf32>
    "tpu.trace_stop"() : () -> ()
    %71 = vector.shape_cast %70 : vector<2x8x8xf32> to vector<16x8xf32>
    %72 = arith.truncf %71 : vector<16x8xf32> to vector<16x8xbf16>
    %c0_32 = arith.constant 0 : index
    %c8 = arith.constant 8 : index
    %73 = vector.load %arg13[%c0_32, %c8] : memref<16x64xbf16, #tpu.memory_space<vmem>>, vector<16x8xbf16>
    tpu.vector_store %arg13[%c0_32, %c8], %72 {strides = array<i32>} : memref<16x64xbf16, #tpu.memory_space<vmem>>, vector<16x8xbf16>,
    %74 = vector.extract_strided_slice %13 {offsets = [0, 16], sizes = [16, 8], strides = [1, 1]} : vector<16x64xf32> to vector<16x8xf32>
    %75 = vector.shape_cast %74 : vector<16x8xf32> to vector<2x8x8xf32>
    %76 = arith.truncf %75 : vector<2x8x8xf32> to vector<2x8x8xbf16>
    %77 = vector.extract_strided_slice %18 {offsets = [0, 16], sizes = [16, 8], strides = [1, 1]} : vector<16x64xf32> to vector<16x8xf32>
    %78 = vector.shape_cast %77 : vector<16x8xf32> to vector<2x8x8xf32>
    %79 = arith.truncf %78 : vector<2x8x8xf32> to vector<2x8x8xbf16>
    %80 = vector.extract_strided_slice %23 {offsets = [0, 16], sizes = [16, 8], strides = [1, 1]} : vector<16x64xf32> to vector<16x8xf32>
    %81 = vector.shape_cast %80 : vector<16x8xf32> to vector<2x8x8xf32>
    %82 = arith.truncf %81 : vector<2x8x8xf32> to vector<2x8x8xbf16>
    "tpu.trace_start"() <{level = 10 : i32, message = "bld,bsd->bls"}> : () -> ()
    %cst_33 = arith.constant dense<0.000000e+00> : vector<2x8x8xf32>
    %83 = tpu.matmul %76, %79, %cst_33 {dimension_numbers = #tpu.dot_dimension_numbers<[2], [2], [1], [1], [0, 0, 0, 1, 1, 1], [0], [0]>} : vector<2x8x8xbf16>, vector<2x8x8xbf16>, vector<2x8x8xf32> -> vector<2x8x8xf32>
    "tpu.trace_stop"() : () -> ()
    %cst_34 = arith.constant dense<0xFF800000> : vector<2x8xf32>
    %84 = vector.multi_reduction <maximumf>, %83, %cst_34 [2] : vector<2x8x8xf32> to vector<2x8xf32>
    %85 = vector.shape_cast %84 : vector<2x8xf32> to vector<2x8x1xf32>
    %86 = vector.broadcast %85 : vector<2x8x1xf32> to vector<2x8x8xf32>
    %87 = arith.subf %83, %86 : vector<2x8x8xf32>
    %88 = math.exp %87 : vector<2x8x8xf32>
    %cst_35 = arith.constant dense<0.000000e+00> : vector<2x8xf32>
    %89 = vector.multi_reduction <add>, %88, %cst_35 [2] : vector<2x8x8xf32> to vector<2x8xf32>
    %90 = vector.shape_cast %89 : vector<2x8xf32> to vector<2x8x1xf32>
    %91 = tpu.reciprocal %90 {approx = true} : vector<2x8x1xf32> -> vector<2x8x1xf32>
    %92 = vector.broadcast %91 : vector<2x8x1xf32> to vector<2x8x8xf32>
    %93 = arith.mulf %88, %92 : vector<2x8x8xf32>
    %94 = arith.truncf %93 : vector<2x8x8xf32> to vector<2x8x8xbf16>
    "tpu.trace_start"() <{level = 10 : i32, message = "bls,bsd->bld"}> : () -> ()
    %cst_36 = arith.constant dense<0.000000e+00> : vector<2x8x8xf32>
    %95 = tpu.matmul %94, %82, %cst_36 {dimension_numbers = #tpu.dot_dimension_numbers<[2], [1], [1], [2], [0, 0, 0, 1, 1, 2], [0], [0]>} : vector<2x8x8xbf16>, vector<2x8x8xbf16>, vector<2x8x8xf32> -> vector<2x8x8xf32>
    "tpu.trace_stop"() : () -> ()
    %96 = vector.shape_cast %95 : vector<2x8x8xf32> to vector<16x8xf32>
    %97 = arith.truncf %96 : vector<16x8xf32> to vector<16x8xbf16>
    %c0_37 = arith.constant 0 : index
    %c16 = arith.constant 16 : index
    %98 = vector.load %arg13[%c0_37, %c16] : memref<16x64xbf16, #tpu.memory_space<vmem>>, vector<16x8xbf16>
    tpu.vector_store %arg13[%c0_37, %c16], %97 {strides = array<i32>} : memref<16x64xbf16, #tpu.memory_space<vmem>>, vector<16x8xbf16>,
    %99 = vector.extract_strided_slice %13 {offsets = [0, 24], sizes = [16, 8], strides = [1, 1]} : vector<16x64xf32> to vector<16x8xf32>
    %100 = vector.shape_cast %99 : vector<16x8xf32> to vector<2x8x8xf32>
    %101 = arith.truncf %100 : vector<2x8x8xf32> to vector<2x8x8xbf16>
    %102 = vector.extract_strided_slice %18 {offsets = [0, 24], sizes = [16, 8], strides = [1, 1]} : vector<16x64xf32> to vector<16x8xf32>
    %103 = vector.shape_cast %102 : vector<16x8xf32> to vector<2x8x8xf32>
    %104 = arith.truncf %103 : vector<2x8x8xf32> to vector<2x8x8xbf16>
    %105 = vector.extract_strided_slice %23 {offsets = [0, 24], sizes = [16, 8], strides = [1, 1]} : vector<16x64xf32> to vector<16x8xf32>
    %106 = vector.shape_cast %105 : vector<16x8xf32> to vector<2x8x8xf32>
    %107 = arith.truncf %106 : vector<2x8x8xf32> to vector<2x8x8xbf16>
    "tpu.trace_start"() <{level = 10 : i32, message = "bld,bsd->bls"}> : () -> ()
    %cst_38 = arith.constant dense<0.000000e+00> : vector<2x8x8xf32>
    %108 = tpu.matmul %101, %104, %cst_38 {dimension_numbers = #tpu.dot_dimension_numbers<[2], [2], [1], [1], [0, 0, 0, 1, 1, 1], [0], [0]>} : vector<2x8x8xbf16>, vector<2x8x8xbf16>, vector<2x8x8xf32> -> vector<2x8x8xf32>
    "tpu.trace_stop"() : () -> ()
    %cst_39 = arith.constant dense<0xFF800000> : vector<2x8xf32>
    %109 = vector.multi_reduction <maximumf>, %108, %cst_39 [2] : vector<2x8x8xf32> to vector<2x8xf32>
    %110 = vector.shape_cast %109 : vector<2x8xf32> to vector<2x8x1xf32>
    %111 = vector.broadcast %110 : vector<2x8x1xf32> to vector<2x8x8xf32>
    %112 = arith.subf %108, %111 : vector<2x8x8xf32>
    %113 = math.exp %112 : vector<2x8x8xf32>
    %cst_40 = arith.constant dense<0.000000e+00> : vector<2x8xf32>
    %114 = vector.multi_reduction <add>, %113, %cst_40 [2] : vector<2x8x8xf32> to vector<2x8xf32>
    %115 = vector.shape_cast %114 : vector<2x8xf32> to vector<2x8x1xf32>
    %116 = tpu.reciprocal %115 {approx = true} : vector<2x8x1xf32> -> vector<2x8x1xf32>
    %117 = vector.broadcast %116 : vector<2x8x1xf32> to vector<2x8x8xf32>
    %118 = arith.mulf %113, %117 : vector<2x8x8xf32>
    %119 = arith.truncf %118 : vector<2x8x8xf32> to vector<2x8x8xbf16>
    "tpu.trace_start"() <{level = 10 : i32, message = "bls,bsd->bld"}> : () -> ()
    %cst_41 = arith.constant dense<0.000000e+00> : vector<2x8x8xf32>
    %120 = tpu.matmul %119, %107, %cst_41 {dimension_numbers = #tpu.dot_dimension_numbers<[2], [1], [1], [2], [0, 0, 0, 1, 1, 2], [0], [0]>} : vector<2x8x8xbf16>, vector<2x8x8xbf16>, vector<2x8x8xf32> -> vector<2x8x8xf32>
    "tpu.trace_stop"() : () -> ()
    %121 = vector.shape_cast %120 : vector<2x8x8xf32> to vector<16x8xf32>
    %122 = arith.truncf %121 : vector<16x8xf32> to vector<16x8xbf16>
    %c0_42 = arith.constant 0 : index
    %c24 = arith.constant 24 : index
    %123 = vector.load %arg13[%c0_42, %c24] : memref<16x64xbf16, #tpu.memory_space<vmem>>, vector<16x8xbf16>
    tpu.vector_store %arg13[%c0_42, %c24], %122 {strides = array<i32>} : memref<16x64xbf16, #tpu.memory_space<vmem>>, vector<16x8xbf16>,
    %124 = vector.extract_strided_slice %13 {offsets = [0, 32], sizes = [16, 8], strides = [1, 1]} : vector<16x64xf32> to vector<16x8xf32>
    %125 = vector.shape_cast %124 : vector<16x8xf32> to vector<2x8x8xf32>
    %126 = arith.truncf %125 : vector<2x8x8xf32> to vector<2x8x8xbf16>
    %127 = vector.extract_strided_slice %18 {offsets = [0, 32], sizes = [16, 8], strides = [1, 1]} : vector<16x64xf32> to vector<16x8xf32>
    %128 = vector.shape_cast %127 : vector<16x8xf32> to vector<2x8x8xf32>
    %129 = arith.truncf %128 : vector<2x8x8xf32> to vector<2x8x8xbf16>
    %130 = vector.extract_strided_slice %23 {offsets = [0, 32], sizes = [16, 8], strides = [1, 1]} : vector<16x64xf32> to vector<16x8xf32>
    %131 = vector.shape_cast %130 : vector<16x8xf32> to vector<2x8x8xf32>
    %132 = arith.truncf %131 : vector<2x8x8xf32> to vector<2x8x8xbf16>
    "tpu.trace_start"() <{level = 10 : i32, message = "bld,bsd->bls"}> : () -> ()
    %cst_43 = arith.constant dense<0.000000e+00> : vector<2x8x8xf32>
    %133 = tpu.matmul %126, %129, %cst_43 {dimension_numbers = #tpu.dot_dimension_numbers<[2], [2], [1], [1], [0, 0, 0, 1, 1, 1], [0], [0]>} : vector<2x8x8xbf16>, vector<2x8x8xbf16>, vector<2x8x8xf32> -> vector<2x8x8xf32>
    "tpu.trace_stop"() : () -> ()
    %cst_44 = arith.constant dense<0xFF800000> : vector<2x8xf32>
    %134 = vector.multi_reduction <maximumf>, %133, %cst_44 [2] : vector<2x8x8xf32> to vector<2x8xf32>
    %135 = vector.shape_cast %134 : vector<2x8xf32> to vector<2x8x1xf32>
    %136 = vector.broadcast %135 : vector<2x8x1xf32> to vector<2x8x8xf32>
    %137 = arith.subf %133, %136 : vector<2x8x8xf32>
    %138 = math.exp %137 : vector<2x8x8xf32>
    %cst_45 = arith.constant dense<0.000000e+00> : vector<2x8xf32>
    %139 = vector.multi_reduction <add>, %138, %cst_45 [2] : vector<2x8x8xf32> to vector<2x8xf32>
    %140 = vector.shape_cast %139 : vector<2x8xf32> to vector<2x8x1xf32>
    %141 = tpu.reciprocal %140 {approx = true} : vector<2x8x1xf32> -> vector<2x8x1xf32>
    %142 = vector.broadcast %141 : vector<2x8x1xf32> to vector<2x8x8xf32>
    %143 = arith.mulf %138, %142 : vector<2x8x8xf32>
    %144 = arith.truncf %143 : vector<2x8x8xf32> to vector<2x8x8xbf16>
    "tpu.trace_start"() <{level = 10 : i32, message = "bls,bsd->bld"}> : () -> ()
    %cst_46 = arith.constant dense<0.000000e+00> : vector<2x8x8xf32>
    %145 = tpu.matmul %144, %132, %cst_46 {dimension_numbers = #tpu.dot_dimension_numbers<[2], [1], [1], [2], [0, 0, 0, 1, 1, 2], [0], [0]>} : vector<2x8x8xbf16>, vector<2x8x8xbf16>, vector<2x8x8xf32> -> vector<2x8x8xf32>
    "tpu.trace_stop"() : () -> ()
    %146 = vector.shape_cast %145 : vector<2x8x8xf32> to vector<16x8xf32>
    %147 = arith.truncf %146 : vector<16x8xf32> to vector<16x8xbf16>
    %c0_47 = arith.constant 0 : index
    %c32 = arith.constant 32 : index
    %148 = vector.load %arg13[%c0_47, %c32] : memref<16x64xbf16, #tpu.memory_space<vmem>>, vector<16x8xbf16>
    tpu.vector_store %arg13[%c0_47, %c32], %147 {strides = array<i32>} : memref<16x64xbf16, #tpu.memory_space<vmem>>, vector<16x8xbf16>,
    %149 = vector.extract_strided_slice %13 {offsets = [0, 40], sizes = [16, 8], strides = [1, 1]} : vector<16x64xf32> to vector<16x8xf32>
    %150 = vector.shape_cast %149 : vector<16x8xf32> to vector<2x8x8xf32>
    %151 = arith.truncf %150 : vector<2x8x8xf32> to vector<2x8x8xbf16>
    %152 = vector.extract_strided_slice %18 {offsets = [0, 40], sizes = [16, 8], strides = [1, 1]} : vector<16x64xf32> to vector<16x8xf32>
    %153 = vector.shape_cast %152 : vector<16x8xf32> to vector<2x8x8xf32>
    %154 = arith.truncf %153 : vector<2x8x8xf32> to vector<2x8x8xbf16>
    %155 = vector.extract_strided_slice %23 {offsets = [0, 40], sizes = [16, 8], strides = [1, 1]} : vector<16x64xf32> to vector<16x8xf32>
    %156 = vector.shape_cast %155 : vector<16x8xf32> to vector<2x8x8xf32>
    %157 = arith.truncf %156 : vector<2x8x8xf32> to vector<2x8x8xbf16>
    "tpu.trace_start"() <{level = 10 : i32, message = "bld,bsd->bls"}> : () -> ()
    %cst_48 = arith.constant dense<0.000000e+00> : vector<2x8x8xf32>
    %158 = tpu.matmul %151, %154, %cst_48 {dimension_numbers = #tpu.dot_dimension_numbers<[2], [2], [1], [1], [0, 0, 0, 1, 1, 1], [0], [0]>} : vector<2x8x8xbf16>, vector<2x8x8xbf16>, vector<2x8x8xf32> -> vector<2x8x8xf32>
    "tpu.trace_stop"() : () -> ()
    %cst_49 = arith.constant dense<0xFF800000> : vector<2x8xf32>
    %159 = vector.multi_reduction <maximumf>, %158, %cst_49 [2] : vector<2x8x8xf32> to vector<2x8xf32>
    %160 = vector.shape_cast %159 : vector<2x8xf32> to vector<2x8x1xf32>
    %161 = vector.broadcast %160 : vector<2x8x1xf32> to vector<2x8x8xf32>
    %162 = arith.subf %158, %161 : vector<2x8x8xf32>
    %163 = math.exp %162 : vector<2x8x8xf32>
    %cst_50 = arith.constant dense<0.000000e+00> : vector<2x8xf32>
    %164 = vector.multi_reduction <add>, %163, %cst_50 [2] : vector<2x8x8xf32> to vector<2x8xf32>
    %165 = vector.shape_cast %164 : vector<2x8xf32> to vector<2x8x1xf32>
    %166 = tpu.reciprocal %165 {approx = true} : vector<2x8x1xf32> -> vector<2x8x1xf32>
    %167 = vector.broadcast %166 : vector<2x8x1xf32> to vector<2x8x8xf32>
    %168 = arith.mulf %163, %167 : vector<2x8x8xf32>
    %169 = arith.truncf %168 : vector<2x8x8xf32> to vector<2x8x8xbf16>
    "tpu.trace_start"() <{level = 10 : i32, message = "bls,bsd->bld"}> : () -> ()
    %cst_51 = arith.constant dense<0.000000e+00> : vector<2x8x8xf32>
    %170 = tpu.matmul %169, %157, %cst_51 {dimension_numbers = #tpu.dot_dimension_numbers<[2], [1], [1], [2], [0, 0, 0, 1, 1, 2], [0], [0]>} : vector<2x8x8xbf16>, vector<2x8x8xbf16>, vector<2x8x8xf32> -> vector<2x8x8xf32>
    "tpu.trace_stop"() : () -> ()
    %171 = vector.shape_cast %170 : vector<2x8x8xf32> to vector<16x8xf32>
    %172 = arith.truncf %171 : vector<16x8xf32> to vector<16x8xbf16>
    %c0_52 = arith.constant 0 : index
    %c40 = arith.constant 40 : index
    %173 = vector.load %arg13[%c0_52, %c40] : memref<16x64xbf16, #tpu.memory_space<vmem>>, vector<16x8xbf16>
    tpu.vector_store %arg13[%c0_52, %c40], %172 {strides = array<i32>} : memref<16x64xbf16, #tpu.memory_space<vmem>>, vector<16x8xbf16>,
    %174 = vector.extract_strided_slice %13 {offsets = [0, 48], sizes = [16, 8], strides = [1, 1]} : vector<16x64xf32> to vector<16x8xf32>
    %175 = vector.shape_cast %174 : vector<16x8xf32> to vector<2x8x8xf32>
    %176 = arith.truncf %175 : vector<2x8x8xf32> to vector<2x8x8xbf16>
    %177 = vector.extract_strided_slice %18 {offsets = [0, 48], sizes = [16, 8], strides = [1, 1]} : vector<16x64xf32> to vector<16x8xf32>
    %178 = vector.shape_cast %177 : vector<16x8xf32> to vector<2x8x8xf32>
    %179 = arith.truncf %178 : vector<2x8x8xf32> to vector<2x8x8xbf16>
    %180 = vector.extract_strided_slice %23 {offsets = [0, 48], sizes = [16, 8], strides = [1, 1]} : vector<16x64xf32> to vector<16x8xf32>
    %181 = vector.shape_cast %180 : vector<16x8xf32> to vector<2x8x8xf32>
    %182 = arith.truncf %181 : vector<2x8x8xf32> to vector<2x8x8xbf16>
    "tpu.trace_start"() <{level = 10 : i32, message = "bld,bsd->bls"}> : () -> ()
    %cst_53 = arith.constant dense<0.000000e+00> : vector<2x8x8xf32>
    %183 = tpu.matmul %176, %179, %cst_53 {dimension_numbers = #tpu.dot_dimension_numbers<[2], [2], [1], [1], [0, 0, 0, 1, 1, 1], [0], [0]>} : vector<2x8x8xbf16>, vector<2x8x8xbf16>, vector<2x8x8xf32> -> vector<2x8x8xf32>
    "tpu.trace_stop"() : () -> ()
    %cst_54 = arith.constant dense<0xFF800000> : vector<2x8xf32>
    %184 = vector.multi_reduction <maximumf>, %183, %cst_54 [2] : vector<2x8x8xf32> to vector<2x8xf32>
    %185 = vector.shape_cast %184 : vector<2x8xf32> to vector<2x8x1xf32>
    %186 = vector.broadcast %185 : vector<2x8x1xf32> to vector<2x8x8xf32>
    %187 = arith.subf %183, %186 : vector<2x8x8xf32>
    %188 = math.exp %187 : vector<2x8x8xf32>
    %cst_55 = arith.constant dense<0.000000e+00> : vector<2x8xf32>
    %189 = vector.multi_reduction <add>, %188, %cst_55 [2] : vector<2x8x8xf32> to vector<2x8xf32>
    %190 = vector.shape_cast %189 : vector<2x8xf32> to vector<2x8x1xf32>
    %191 = tpu.reciprocal %190 {approx = true} : vector<2x8x1xf32> -> vector<2x8x1xf32>
    %192 = vector.broadcast %191 : vector<2x8x1xf32> to vector<2x8x8xf32>
    %193 = arith.mulf %188, %192 : vector<2x8x8xf32>
    %194 = arith.truncf %193 : vector<2x8x8xf32> to vector<2x8x8xbf16>
    "tpu.trace_start"() <{level = 10 : i32, message = "bls,bsd->bld"}> : () -> ()
    %cst_56 = arith.constant dense<0.000000e+00> : vector<2x8x8xf32>
    %195 = tpu.matmul %194, %182, %cst_56 {dimension_numbers = #tpu.dot_dimension_numbers<[2], [1], [1], [2], [0, 0, 0, 1, 1, 2], [0], [0]>} : vector<2x8x8xbf16>, vector<2x8x8xbf16>, vector<2x8x8xf32> -> vector<2x8x8xf32>
    "tpu.trace_stop"() : () -> ()
    %196 = vector.shape_cast %195 : vector<2x8x8xf32> to vector<16x8xf32>
    %197 = arith.truncf %196 : vector<16x8xf32> to vector<16x8xbf16>
    %c0_57 = arith.constant 0 : index
    %c48 = arith.constant 48 : index
    %198 = vector.load %arg13[%c0_57, %c48] : memref<16x64xbf16, #tpu.memory_space<vmem>>, vector<16x8xbf16>
    tpu.vector_store %arg13[%c0_57, %c48], %197 {strides = array<i32>} : memref<16x64xbf16, #tpu.memory_space<vmem>>, vector<16x8xbf16>,
    %199 = vector.extract_strided_slice %13 {offsets = [0, 56], sizes = [16, 8], strides = [1, 1]} : vector<16x64xf32> to vector<16x8xf32>
    %200 = vector.shape_cast %199 : vector<16x8xf32> to vector<2x8x8xf32>
    %201 = arith.truncf %200 : vector<2x8x8xf32> to vector<2x8x8xbf16>
    %202 = vector.extract_strided_slice %18 {offsets = [0, 56], sizes = [16, 8], strides = [1, 1]} : vector<16x64xf32> to vector<16x8xf32>
    %203 = vector.shape_cast %202 : vector<16x8xf32> to vector<2x8x8xf32>
    %204 = arith.truncf %203 : vector<2x8x8xf32> to vector<2x8x8xbf16>
    %205 = vector.extract_strided_slice %23 {offsets = [0, 56], sizes = [16, 8], strides = [1, 1]} : vector<16x64xf32> to vector<16x8xf32>
    %206 = vector.shape_cast %205 : vector<16x8xf32> to vector<2x8x8xf32>
    %207 = arith.truncf %206 : vector<2x8x8xf32> to vector<2x8x8xbf16>
    "tpu.trace_start"() <{level = 10 : i32, message = "bld,bsd->bls"}> : () -> ()
    %cst_58 = arith.constant dense<0.000000e+00> : vector<2x8x8xf32>
    %208 = tpu.matmul %201, %204, %cst_58 {dimension_numbers = #tpu.dot_dimension_numbers<[2], [2], [1], [1], [0, 0, 0, 1, 1, 1], [0], [0]>} : vector<2x8x8xbf16>, vector<2x8x8xbf16>, vector<2x8x8xf32> -> vector<2x8x8xf32>
    "tpu.trace_stop"() : () -> ()
    %cst_59 = arith.constant dense<0xFF800000> : vector<2x8xf32>
    %209 = vector.multi_reduction <maximumf>, %208, %cst_59 [2] : vector<2x8x8xf32> to vector<2x8xf32>
    %210 = vector.shape_cast %209 : vector<2x8xf32> to vector<2x8x1xf32>
    %211 = vector.broadcast %210 : vector<2x8x1xf32> to vector<2x8x8xf32>
    %212 = arith.subf %208, %211 : vector<2x8x8xf32>
    %213 = math.exp %212 : vector<2x8x8xf32>
    %cst_60 = arith.constant dense<0.000000e+00> : vector<2x8xf32>
    %214 = vector.multi_reduction <add>, %213, %cst_60 [2] : vector<2x8x8xf32> to vector<2x8xf32>
    %215 = vector.shape_cast %214 : vector<2x8xf32> to vector<2x8x1xf32>
    %216 = tpu.reciprocal %215 {approx = true} : vector<2x8x1xf32> -> vector<2x8x1xf32>
    %217 = vector.broadcast %216 : vector<2x8x1xf32> to vector<2x8x8xf32>
    %218 = arith.mulf %213, %217 : vector<2x8x8xf32>
    %219 = arith.truncf %218 : vector<2x8x8xf32> to vector<2x8x8xbf16>
    "tpu.trace_start"() <{level = 10 : i32, message = "bls,bsd->bld"}> : () -> ()
    %cst_61 = arith.constant dense<0.000000e+00> : vector<2x8x8xf32>
    %220 = tpu.matmul %219, %207, %cst_61 {dimension_numbers = #tpu.dot_dimension_numbers<[2], [1], [1], [2], [0, 0, 0, 1, 1, 2], [0], [0]>} : vector<2x8x8xbf16>, vector<2x8x8xbf16>, vector<2x8x8xf32> -> vector<2x8x8xf32>
    "tpu.trace_stop"() : () -> ()
    %221 = vector.shape_cast %220 : vector<2x8x8xf32> to vector<16x8xf32>
    %222 = arith.truncf %221 : vector<16x8xf32> to vector<16x8xbf16>
    %c0_62 = arith.constant 0 : index
    %c56 = arith.constant 56 : index
    %223 = vector.load %arg13[%c0_62, %c56] : memref<16x64xbf16, #tpu.memory_space<vmem>>, vector<16x8xbf16>
    tpu.vector_store %arg13[%c0_62, %c56], %222 {strides = array<i32>} : memref<16x64xbf16, #tpu.memory_space<vmem>>, vector<16x8xbf16>,
    %c0_63 = arith.constant 0 : index
    %c0_64 = arith.constant 0 : index
    %224 = vector.load %arg13[%c0_63, %c0_64] : memref<16x64xbf16, #tpu.memory_space<vmem>>, vector<16x64xbf16>
    %c0_65 = arith.constant 0 : index
    %c0_66 = arith.constant 0 : index
    %225 = vector.load %arg10[%c0_65, %c0_66] : memref<64x64xbf16, #tpu.memory_space<vmem>>, vector<64x64xbf16>
    %cst_67 = arith.constant dense<0.000000e+00> : vector<16x64xf32>
    %226 = tpu.matmul %224, %225, %cst_67 {dimension_numbers = #tpu.dot_dimension_numbers<[1], [0], [0], [1], [0, 0, 1, 1], [], []>} : vector<16x64xbf16>, vector<64x64xbf16>, vector<16x64xf32> -> vector<16x64xf32>
    %c0_68 = arith.constant 0 : index
    %c0_69 = arith.constant 0 : index
    %227 = vector.load %arg11[%c0_68, %c0_69] : memref<1x64xf32, #tpu.memory_space<vmem>>, vector<1x64xf32>
    %228 = vector.broadcast %227 : vector<1x64xf32> to vector<16x64xf32>
    %229 = arith.addf %226, %228 : vector<16x64xf32>
    %230 = math.tanh %229 : vector<16x64xf32>
    %c0_70 = arith.constant 0 : index
    %c0_71 = arith.constant 0 : index
    %231 = vector.load %arg12[%c0_70, %c0_71] : memref<16x64xf32, #tpu.memory_space<vmem>>, vector<16x64xf32>
    tpu.vector_store %arg12[%c0_70, %c0_71], %230 {strides = array<i32>} : memref<16x64xf32, #tpu.memory_space<vmem>>, vector<16x64xf32>,
    return
  }
  func.func @transform_0(%arg0: i32) -> (i32, i32, i32) {
    %c0_i32 = arith.constant 0 : i32
    %c0_i32_0 = arith.constant 0 : i32
    %c0_i32_1 = arith.constant 0 : i32
    return %arg0, %c0_i32, %c0_i32_0 : i32, i32, i32
  }
  func.func @transform_1(%arg0: i32) -> (i32, i32, i32) {
    %c0_i32 = arith.constant 0 : i32
    %c0_i32_0 = arith.constant 0 : i32
    %c0_i32_1 = arith.constant 0 : i32
    return %arg0, %c0_i32, %c0_i32_0 : i32, i32, i32
  }
  func.func @transform_2(%arg0: i32) -> (i32, i32, i32) {
    %c0_i32 = arith.constant 0 : i32
    %c0_i32_0 = arith.constant 0 : i32
    %c0_i32_1 = arith.constant 0 : i32
    return %arg0, %c0_i32, %c0_i32_0 : i32, i32, i32
  }
  func.func @transform_3(%arg0: i32) -> (i32, i32) {
    %c0_i32 = arith.constant 0 : i32
    %c0_i32_0 = arith.constant 0 : i32
    %c0_i32_1 = arith.constant 0 : i32
    return %c0_i32, %c0_i32_0 : i32, i32
  }
  func.func @transform_4(%arg0: i32) -> (i32, i32) {
    %c0_i32 = arith.constant 0 : i32
    %c0_i32_0 = arith.constant 0 : i32
    %c0_i32_1 = arith.constant 0 : i32
    return %c0_i32, %c0_i32_0 : i32, i32
  }
  func.func @transform_5(%arg0: i32) -> (i32, i32) {
    %c0_i32 = arith.constant 0 : i32
    %c0_i32_0 = arith.constant 0 : i32
    %c0_i32_1 = arith.constant 0 : i32
    return %c0_i32, %c0_i32_0 : i32, i32
  }
  func.func @transform_6(%arg0: i32) -> (i32, i32) {
    %c0_i32 = arith.constant 0 : i32
    %c0_i32_0 = arith.constant 0 : i32
    %c0_i32_1 = arith.constant 0 : i32
    return %c0_i32, %c0_i32_0 : i32, i32
  }
  func.func @transform_7(%arg0: i32) -> (i32, i32) {
    %c0_i32 = arith.constant 0 : i32
    %c0_i32_0 = arith.constant 0 : i32
    %c0_i32_1 = arith.constant 0 : i32
    return %c0_i32, %c0_i32_0 : i32, i32
  }
  func.func @transform_8(%arg0: i32) -> (i32, i32) {
    %c0_i32 = arith.constant 0 : i32
    %c0_i32_0 = arith.constant 0 : i32
    %c0_i32_1 = arith.constant 0 : i32
    return %c0_i32, %c0_i32_0 : i32, i32
  }
  func.func @transform_9(%arg0: i32) -> (i32, i32) {
    %c0_i32 = arith.constant 0 : i32
    %c0_i32_0 = arith.constant 0 : i32
    %c0_i32_1 = arith.constant 0 : i32
    return %c0_i32, %c0_i32_0 : i32, i32
  }
  func.func @transform_10(%arg0: i32) -> (i32, i32) {
    %c0_i32 = arith.constant 0 : i32
    %c0_i32_0 = arith.constant 0 : i32
    %c0_i32_1 = arith.constant 0 : i32
    return %c0_i32, %c0_i32_0 : i32, i32
  }
  func.func @transform_11(%arg0: i32) -> (i32, i32) {
    %c0_i32 = arith.constant 0 : i32
    %c0_i32_0 = arith.constant 0 : i32
    return %arg0, %c0_i32 : i32, i32
  }
}

</mosaic_0001>

<llo_original>
// kernel: tpu_custom_call.1
$region0: #{tpu_custom_call.1}
  #allocation0 [shape = 'u32[]', space=smem, size = 0x4, offset = 0x4, fixed_abs, tag = 'smem constant byte address 0x4 - core index']
  #allocation1 [shape = 'u32[144,128]{1,0:T(1,128)}', space=vmem, size = 0x12000, scoped, tag = 'internal scratch']
  #allocation2 [shape = 'bf16[16,64]{1,0:T(16,128)(2,1)}', space=vmem, size = 0x1000, scoped, tag = 'scratch operand']
  %s0 = inlined_call_operand.hbm [shape: f32[2,8,64], index: 0, kind: input, shape index: {}]
  %s1 = inlined_call_operand.hbm [shape: f32[2,8,64], index: 1, kind: input, shape index: {}]
  %s2 = inlined_call_operand.hbm [shape: f32[2,8,64], index: 2, kind: input, shape index: {}]
  %s3 = inlined_call_operand.hbm [shape: bf16[64,64], index: 3, kind: input, shape index: {}]
  %s4 = inlined_call_operand.hbm [shape: bf16[64,64], index: 4, kind: input, shape index: {}]
  %s5 = inlined_call_operand.hbm [shape: bf16[64,64], index: 5, kind: input, shape index: {}]
  %s6 = inlined_call_operand.vmem [shape: f32[1,64], index: 6, kind: input, shape index: {}]
  %s7 = inlined_call_operand.vmem [shape: f32[1,64], index: 7, kind: input, shape index: {}]
  %s8 = inlined_call_operand.hbm [shape: f32[1,64], index: 8, kind: input, shape index: {}]
  %s9 = inlined_call_operand.vmem [shape: bf16[64,64], index: 9, kind: input, shape index: {}]
  %s10 = inlined_call_operand.vmem [shape: f32[1,64], index: 10, kind: input, shape index: {}]
  %s11 = inlined_call_operand.hbm [shape: f32[16,64], index: 11, kind: output, shape index: {}]
  %s12 = sld [smem:[#allocation0]]
  $region82: #{tpu_custom_call.1} parent=0
    _
  %s14 = ssub.s32 1, %s12
  %s15 = scalar_select 0, %s14, %s12
  $region1: #{tpu_custom_call.1} parent=0
    #allocation3 [shape = 'u8[8192]{0}', space=vmem, size = 0x2000, scoped, tag = 'input window, operand 0, single buffered']
    #allocation4 [shape = 's32[1]{0}', space=sflag, size = 0x4, scoped, tag = 'scoped memory for tpu_custom_call.1']
    #allocation5 [shape = 's32[1]{0}', space=sflag, size = 0x4, scoped, tag = 'scoped memory for tpu_custom_call.1']
    #allocation6 [shape = 'u8[8192]{0}', space=vmem, size = 0x2000, scoped, tag = 'input window, operand 1, single buffered']
    #allocation7 [shape = 's32[1]{0}', space=sflag, size = 0x4, scoped, tag = 'scoped memory for tpu_custom_call.1']
    #allocation8 [shape = 'u8[8192]{0}', space=vmem, size = 0x2000, scoped, tag = 'input window, operand 2, single buffered']
    #allocation9 [shape = 'u8[16384]{0}', space=vmem, size = 0x4000, scoped, tag = 'input window, operand 3, single buffered']
    #allocation10 [shape = 's32[1]{0}', space=sflag, size = 0x4, scoped, tag = 'scoped memory for tpu_custom_call.1']
    #allocation11 [shape = 'u8[16384]{0}', space=vmem, size = 0x4000, scoped, tag = 'input window, operand 4, single buffered']
    #allocation12 [shape = 'u8[16384]{0}', space=vmem, size = 0x4000, scoped, tag = 'input window, operand 5, single buffered']
    #allocation13 [shape = 's32[1]{0}', space=sflag, size = 0x4, scoped, tag = 'scoped memory for tpu_custom_call.1']
    #allocation14 [shape = 'u8[512]{0}', space=vmem, size = 0x400, scoped, tag = 'input window, operand 8, single buffered']
    #allocation15 [shape = 'u8[8192]{0}', space=vmem, size = 0x2000, scoped, tag = 'output window, operand 0, single buffered']
    %16 = vsyncpa [#allocation4], 0
    %17 = vsyncpa [#allocation7], 0
    %18 = vsyncpa [#allocation10], 0
    %19 = vsyncpa [#allocation13], 0
    %20 = vsyncpa [#allocation5], 0
    // Predicated region
    $region2: #{tpu_custom_call.1} parent=1 // pred_check
      _
    $region3: #{tpu_custom_call.1} parent=1 // pred_check_branch
      %22 = sbr.rel (0) target = $region5
    $region4: #{tpu_custom_call.1} parent=1 // pred_region
      %s24 = ssub.s32 256, 256
      %25 = vsyncadd [#allocation4], %s24
      %s26 = sshll.u32 [#allocation3], 4
      %s27 = int_to_ptr.vmem [resolvable:$true] %s26
      %32 = dma.hbm_to_vmem [thread:$0]  %s0, 256, %s27, [#allocation4], 128, 128, 8
    $region5: #{tpu_custom_call.1} parent=1 // pred_fallthru
      _
    // Predicated region
    $region6: #{tpu_custom_call.1} parent=1 // pred_check
      _
    $region7: #{tpu_custom_call.1} parent=1 // pred_check_branch
      %34 = sbr.rel (0) target = $region9
    $region8: #{tpu_custom_call.1} parent=1 // pred_region
      %s36 = ssub.s32 256, 256
      %37 = vsyncadd [#allocation7], %s36
      %s38 = sshll.u32 [#allocation6], 4
      %s39 = int_to_ptr.vmem [resolvable:$true] %s38
      %44 = dma.hbm_to_vmem [thread:$0]  %s1, 256, %s39, [#allocation7], 128, 128, 8
    $region9: #{tpu_custom_call.1} parent=1 // pred_fallthru
      _
    // Predicated region
    $region10: #{tpu_custom_call.1} parent=1 // pred_check
      _
    $region11: #{tpu_custom_call.1} parent=1 // pred_check_branch
      %46 = sbr.rel (0) target = $region13
    $region12: #{tpu_custom_call.1} parent=1 // pred_region
      %s48 = ssub.s32 256, 256
      %49 = vsyncadd [#allocation7], %s48
      %s50 = sshll.u32 [#allocation8], 4
      %s51 = int_to_ptr.vmem [resolvable:$true] %s50
      %56 = dma.hbm_to_vmem [thread:$0]  %s2, 256, %s51, [#allocation7], 128, 128, 8
    $region13: #{tpu_custom_call.1} parent=1 // pred_fallthru
      _
    // Predicated region
    $region14: #{tpu_custom_call.1} parent=1 // pred_check
      _
    $region15: #{tpu_custom_call.1} parent=1 // pred_check_branch
      %58 = sbr.rel (0) target = $region17
    $region16: #{tpu_custom_call.1} parent=1 // pred_region
      %s60 = ssub.s32 512, 512
      %61 = vsyncadd [#allocation10], %s60
      %s62 = sshll.u32 [#allocation9], 4
      %s63 = int_to_ptr.vmem [resolvable:$true] %s62
      %68 = dma.hbm_to_vmem [thread:$0]  %s3, 512, %s63, [#allocation10], 64, 64, 4
    $region17: #{tpu_custom_call.1} parent=1 // pred_fallthru
      _
    // Predicated region
    $region18: #{tpu_custom_call.1} parent=1 // pred_check
      _
    $region19: #{tpu_custom_call.1} parent=1 // pred_check_branch
      %70 = sbr.rel (0) target = $region21
    $region20: #{tpu_custom_call.1} parent=1 // pred_region
      %s72 = ssub.s32 512, 512
      %73 = vsyncadd [#allocation10], %s72
      %s74 = sshll.u32 [#allocation11], 4
      %s75 = int_to_ptr.vmem [resolvable:$true] %s74
      %80 = dma.hbm_to_vmem [thread:$0]  %s4, 512, %s75, [#allocation10], 64, 64, 4
    $region21: #{tpu_custom_call.1} parent=1 // pred_fallthru
      _
    // Predicated region
    $region22: #{tpu_custom_call.1} parent=1 // pred_check
      _
    $region23: #{tpu_custom_call.1} parent=1 // pred_check_branch
      %82 = sbr.rel (0) target = $region25
    $region24: #{tpu_custom_call.1} parent=1 // pred_region
      %s84 = ssub.s32 512, 512
      %85 = vsyncadd [#allocation13], %s84
      %s86 = sshll.u32 [#allocation12], 4
      %s87 = int_to_ptr.vmem [resolvable:$true] %s86
      %92 = dma.hbm_to_vmem [thread:$0]  %s5, 512, %s87, [#allocation13], 64, 64, 4
    $region25: #{tpu_custom_call.1} parent=1 // pred_fallthru
      _
    // Predicated region
    $region26: #{tpu_custom_call.1} parent=1 // pred_check
      _
    $region27: #{tpu_custom_call.1} parent=1 // pred_check_branch
      %94 = sbr.rel (0) target = $region29
    $region28: #{tpu_custom_call.1} parent=1 // pred_region
      _
    $region29: #{tpu_custom_call.1} parent=1 // pred_fallthru
      _
    // Predicated region
    $region30: #{tpu_custom_call.1} parent=1 // pred_check
      _
    $region31: #{tpu_custom_call.1} parent=1 // pred_check_branch
      %96 = sbr.rel (0) target = $region33
    $region32: #{tpu_custom_call.1} parent=1 // pred_region
      _
    $region33: #{tpu_custom_call.1} parent=1 // pred_fallthru
      _
    // Predicated region
    $region34: #{tpu_custom_call.1} parent=1 // pred_check
      _
    $region35: #{tpu_custom_call.1} parent=1 // pred_check_branch
      %98 = sbr.rel (0) target = $region37
    $region36: #{tpu_custom_call.1} parent=1 // pred_region
      %s100 = ssub.s32 16, 16
      %101 = vsyncadd [#allocation13], %s100
      %s103 = sshll.u32 [#allocation14], 4
      %s104 = int_to_ptr.vmem [resolvable:$true] %s103
      %106 = dma.hbm_to_vmem [thread:$0]  %s8, 16, %s104, [#allocation13]
    $region37: #{tpu_custom_call.1} parent=1 // pred_fallthru
      _
    // Predicated region
    $region38: #{tpu_custom_call.1} parent=1 // pred_check
      _
    $region39: #{tpu_custom_call.1} parent=1 // pred_check_branch
      %108 = sbr.rel (0) target = $region41
    $region40: #{tpu_custom_call.1} parent=1 // pred_region
      _
    $region41: #{tpu_custom_call.1} parent=1 // pred_fallthru
      _
    // Predicated region
    $region42: #{tpu_custom_call.1} parent=1 // pred_check
      _
    $region43: #{tpu_custom_call.1} parent=1 // pred_check_branch
      %110 = sbr.rel (0) target = $region45
    $region44: #{tpu_custom_call.1} parent=1 // pred_region
      _
    $region45: #{tpu_custom_call.1} parent=1 // pred_fallthru
      _
    // Predicated region
    $region46: #{tpu_custom_call.1} parent=1 // pred_check
      _
    $region47: #{tpu_custom_call.1} parent=1 // pred_check_branch
      %112 = sbr.rel (0) target = $region49
    $region48: #{tpu_custom_call.1} parent=1 // pred_region
      %113 = dma.done [#allocation4], 256
    $region49: #{tpu_custom_call.1} parent=1 // pred_fallthru
      _
    // Predicated region
    $region50: #{tpu_custom_call.1} parent=1 // pred_check
      _
    $region51: #{tpu_custom_call.1} parent=1 // pred_check_branch
      %115 = sbr.rel (0) target = $region53
    $region52: #{tpu_custom_call.1} parent=1 // pred_region
      %116 = dma.done [#allocation7], 256
    $region53: #{tpu_custom_call.1} parent=1 // pred_fallthru
      _
    // Predicated region
    $region54: #{tpu_custom_call.1} parent=1 // pred_check
      _
    $region55: #{tpu_custom_call.1} parent=1 // pred_check_branch
      %118 = sbr.rel (0) target = $region57
    $region56: #{tpu_custom_call.1} parent=1 // pred_region
      %119 = dma.done [#allocation7], 256
    $region57: #{tpu_custom_call.1} parent=1 // pred_fallthru
      _
    // Predicated region
    $region58: #{tpu_custom_call.1} parent=1 // pred_check
      _
    $region59: #{tpu_custom_call.1} parent=1 // pred_check_branch
      %121 = sbr.rel (0) target = $region61
    $region60: #{tpu_custom_call.1} parent=1 // pred_region
      %122 = dma.done [#allocation10], 512
    $region61: #{tpu_custom_call.1} parent=1 // pred_fallthru
      _
    // Predicated region
    $region62: #{tpu_custom_call.1} parent=1 // pred_check
      _
    $region63: #{tpu_custom_call.1} parent=1 // pred_check_branch
      %124 = sbr.rel (0) target = $region65
    $region64: #{tpu_custom_call.1} parent=1 // pred_region
      %125 = dma.done [#allocation10], 512
    $region65: #{tpu_custom_call.1} parent=1 // pred_fallthru
      _
    // Predicated region
    $region66: #{tpu_custom_call.1} parent=1 // pred_check
      _
    $region67: #{tpu_custom_call.1} parent=1 // pred_check_branch
      %127 = sbr.rel (0) target = $region69
    $region68: #{tpu_custom_call.1} parent=1 // pred_region
      %128 = dma.done [#allocation13], 512
    $region69: #{tpu_custom_call.1} parent=1 // pred_fallthru
      _
    // Predicated region
    $region70: #{tpu_custom_call.1} parent=1 // pred_check
      _
    $region71: #{tpu_custom_call.1} parent=1 // pred_check_branch
      %130 = sbr.rel (0) target = $region73
    $region72: #{tpu_custom_call.1} parent=1 // pred_region
      %131 = dma.done [#allocation13], 16
    $region73: #{tpu_custom_call.1} parent=1 // pred_fallthru
      _
    %v133 = vld [vmem:[#allocation3] sm:$0xff]
    %v134 = vld [vmem:[#allocation3 + $0x8] sm:$0xff]
    %v135 = vpack.c.bf16 %v134, %v133
    %v136 = vld [vmem:[#allocation6] sm:$0xff]
    %v137 = vld [vmem:[#allocation6 + $0x8] sm:$0xff]
    %v138 = vpack.c.bf16 %v137, %v136
    %v139 = vld [vmem:[#allocation8] sm:$0xff]
    %v140 = vld [vmem:[#allocation8 + $0x8] sm:$0xff]
    %v141 = vpack.c.bf16 %v140, %v139
    %v142 = vld [vmem:[#allocation9] sm:$0xf]
    %v143 = vld [vmem:[#allocation9 + $0x4] sm:$0xf]
    %v144 = vld [vmem:[#allocation9 + $0x8] sm:$0xf]
    %v145 = vld [vmem:[#allocation9 + $0xc] sm:$0xf]
    %v146 = vld [vmem:[#allocation9 + $0x10] sm:$0xf]
    %v147 = vld [vmem:[#allocation9 + $0x14] sm:$0xf]
    %v148 = vld [vmem:[#allocation9 + $0x18] sm:$0xf]
    %v149 = vld [vmem:[#allocation9 + $0x1c] sm:$0xf]
    %v150 = vld [vmem:[%s6] sm:$0x1]
    %v152 = vlaneseq
    %v153 = vshrl.u32 %v152, 7
    %v154 = vsub.s32 0, %v153
    %v155 = vrot.slane %v150, %v154
    %v165 = vunpack.c.l.b16 %v142
    %v166 = vunpack.c.l.b16 %v143
    %v167 = vunpack.c.l.b16 %v144
    %v168 = vunpack.c.l.b16 %v145
    %v169 = vunpack.c.l.b16 %v146
    %v170 = vunpack.c.l.b16 %v147
    %v171 = vunpack.c.l.b16 %v148
    %v172 = vunpack.c.l.b16 %v149
    %v173 = vpack.c.b16 %v166, %v165
    %v174 = vpack.c.b16 %v168, %v167
    %v175 = vpack.c.b16 %v170, %v169
    %v176 = vpack.c.b16 %v172, %v171
    %vm181 = vcmask 523264
    %v183 = vsel %vm181, %v135, 0
    %185 = vmatprep.subr.bf16.mxu0 0
    %186 = vmatpush1.bf16.msra.mxu0 %v173
    %187 = vmatprep.subr.bf16.mxu0 0
    %188 = vmatpush1.bf16.msra.mxu0 %v174
    %189 = vmatprep.subr.bf16.mxu0 0
    %190 = vmatpush1.bf16.msra.mxu0 %v175
    %191 = vmatprep.subr.bf16.mxu0 0
    %192 = vmatpush1.bf16.msra.mxu0 %v176
    %193 = vmatprep.subr.bf16.mxu0 0
    %194 = vmatpush1.bf16.msra.mxu0 0
    %195 = vmatprep.subr.bf16.mxu0 0
    %196 = vmatpush1.bf16.msra.mxu0 0
    %197 = vmatprep.subr.bf16.mxu0 0
    %198 = vmatpush1.bf16.msra.mxu0 0
    %199 = vmatprep.subr.bf16.mxu0 0
    %200 = vmatpush1.bf16.msra.mxu0 0
    %201 = vmatprep.subr.bf16.mxu0 0
    %202 = vmatpush1.bf16.msra.mxu0 0
    %203 = vmatprep.subr.bf16.mxu0 0
    %204 = vmatpush1.bf16.msra.mxu0 0
    %205 = vmatprep.subr.bf16.mxu0 0
    %206 = vmatpush1.bf16.msra.mxu0 0
    %207 = vmatprep.subr.bf16.mxu0 0
    %208 = vmatpush1.bf16.msra.mxu0 0
    %209 = vmatprep.subr.bf16.mxu0 0
    %210 = vmatpush1.bf16.msra.mxu0 0
    %211 = vmatprep.subr.bf16.mxu0 0
    %212 = vmatpush1.bf16.msra.mxu0 0
    %213 = vmatprep.subr.bf16.mxu0 0
    %214 = vmatpush1.bf16.msra.mxu0 0
    %215 = vmatprep.subr.bf16.mxu0 0
    %216 = vmatpush1.bf16.msra.mxu0 0
    %217 = vmatprep.mubr.bf16.mxu0 0
    %218 = vmatmul.mubr.bf16.gmra.mrb[0].mxu0 %v183
    %v219 = vpop.f32.mrb[0].mxu0
    %v220 = vadd.f32 %v155, %v219
    %v221 = vpop.f32.mrb[0].mxu0
    %v222 = vpop.f32.mrb[0].mxu0
    %v223 = vadd.f32 %v155, %v222
    %v224 = vpop.f32.mrb[0].mxu0
    %225 = vdwg.mxu0
    %v226 = vld [vmem:[#allocation11] sm:$0xf]
    %v227 = vld [vmem:[#allocation11 + $0x4] sm:$0xf]
    %v228 = vld [vmem:[#allocation11 + $0x8] sm:$0xf]
    %v229 = vld [vmem:[#allocation11 + $0xc] sm:$0xf]
    %v230 = vld [vmem:[#allocation11 + $0x10] sm:$0xf]
    %v231 = vld [vmem:[#allocation11 + $0x14] sm:$0xf]
    %v232 = vld [vmem:[#allocation11 + $0x18] sm:$0xf]
    %v233 = vld [vmem:[#allocation11 + $0x1c] sm:$0xf]
    %v234 = vld [vmem:[%s7] sm:$0x1]
    %v236 = vlaneseq
    %v237 = vshrl.u32 %v236, 7
    %v238 = vsub.s32 0, %v237
    %v239 = vrot.slane %v234, %v238
    %v249 = vunpack.c.l.b16 %v226
    %v250 = vunpack.c.l.b16 %v227
    %v251 = vunpack.c.l.b16 %v228
    %v252 = vunpack.c.l.b16 %v229
    %v253 = vunpack.c.l.b16 %v230
    %v254 = vunpack.c.l.b16 %v231
    %v255 = vunpack.c.l.b16 %v232
    %v256 = vunpack.c.l.b16 %v233
    %v257 = vpack.c.b16 %v250, %v249
    %v258 = vpack.c.b16 %v252, %v251
    %v259 = vpack.c.b16 %v254, %v253
    %v260 = vpack.c.b16 %v256, %v255
    %v266 = vsel %vm181, %v138, 0
    %268 = vmatprep.subr.bf16.mxu0 0
    %269 = vmatpush1.bf16.msra.mxu0 %v257
    %270 = vmatprep.subr.bf16.mxu0 0
    %271 = vmatpush1.bf16.msra.mxu0 %v258
    %272 = vmatprep.subr.bf16.mxu0 0
    %273 = vmatpush1.bf16.msra.mxu0 %v259
    %274 = vmatprep.subr.bf16.mxu0 0
    %275 = vmatpush1.bf16.msra.mxu0 %v260
    %276 = vmatprep.subr.bf16.mxu0 0
    %277 = vmatpush1.bf16.msra.mxu0 0
    %278 = vmatprep.subr.bf16.mxu0 0
    %279 = vmatpush1.bf16.msra.mxu0 0
    %280 = vmatprep.subr.bf16.mxu0 0
    %281 = vmatpush1.bf16.msra.mxu0 0
    %282 = vmatprep.subr.bf16.mxu0 0
    %283 = vmatpush1.bf16.msra.mxu0 0
    %284 = vmatprep.subr.bf16.mxu0 0
    %285 = vmatpush1.bf16.msra.mxu0 0
    %286 = vmatprep.subr.bf16.mxu0 0
    %287 = vmatpush1.bf16.msra.mxu0 0
    %288 = vmatprep.subr.bf16.mxu0 0
    %289 = vmatpush1.bf16.msra.mxu0 0
    %290 = vmatprep.subr.bf16.mxu0 0
    %291 = vmatpush1.bf16.msra.mxu0 0
    %292 = vmatprep.subr.bf16.mxu0 0
    %293 = vmatpush1.bf16.msra.mxu0 0
    %294 = vmatprep.subr.bf16.mxu0 0
    %295 = vmatpush1.bf16.msra.mxu0 0
    %296 = vmatprep.subr.bf16.mxu0 0
    %297 = vmatpush1.bf16.msra.mxu0 0
    %298 = vmatprep.subr.bf16.mxu0 0
    %299 = vmatpush1.bf16.msra.mxu0 0
    %300 = vmatprep.mubr.bf16.mxu0 0
    %301 = vmatmul.mubr.bf16.gmra.mrb[0].mxu0 %v266
    %v302 = vpop.f32.mrb[0].mxu0
    %v303 = vadd.f32 %v239, %v302
    %v304 = vpop.f32.mrb[0].mxu0
    %v305 = vpop.f32.mrb[0].mxu0
    %v306 = vadd.f32 %v239, %v305
    %v307 = vpop.f32.mrb[0].mxu0
    %308 = vdwg.mxu0
    %v309 = vld [vmem:[#allocation12] sm:$0xf]
    %v310 = vld [vmem:[#allocation12 + $0x4] sm:$0xf]
    %v311 = vld [vmem:[#allocation12 + $0x8] sm:$0xf]
    %v312 = vld [vmem:[#allocation12 + $0xc] sm:$0xf]
    %v313 = vld [vmem:[#allocation12 + $0x10] sm:$0xf]
    %v314 = vld [vmem:[#allocation12 + $0x14] sm:$0xf]
    %v315 = vld [vmem:[#allocation12 + $0x18] sm:$0xf]
    %v316 = vld [vmem:[#allocation12 + $0x1c] sm:$0xf]
    %v317 = vld [vmem:[#allocation14] sm:$0x1]
    %v319 = vlaneseq
    %v320 = vshrl.u32 %v319, 7
    %v321 = vsub.s32 0, %v320
    %v322 = vrot.slane %v317, %v321
    %v332 = vunpack.c.l.b16 %v309
    %v333 = vunpack.c.l.b16 %v310
    %v334 = vunpack.c.l.b16 %v311
    %v335 = vunpack.c.l.b16 %v312
    %v336 = vunpack.c.l.b16 %v313
    %v337 = vunpack.c.l.b16 %v314
    %v338 = vunpack.c.l.b16 %v315
    %v339 = vunpack.c.l.b16 %v316
    %v340 = vpack.c.b16 %v333, %v332
    %v341 = vpack.c.b16 %v335, %v334
    %v342 = vpack.c.b16 %v337, %v336
    %v343 = vpack.c.b16 %v339, %v338
    %v349 = vsel %vm181, %v141, 0
    %351 = vmatprep.subr.bf16.mxu0 0
    %352 = vmatpush1.bf16.msra.mxu0 %v340
    %353 = vmatprep.subr.bf16.mxu0 0
    %354 = vmatpush1.bf16.msra.mxu0 %v341
    %355 = vmatprep.subr.bf16.mxu0 0
    %356 = vmatpush1.bf16.msra.mxu0 %v342
    %357 = vmatprep.subr.bf16.mxu0 0
    %358 = vmatpush1.bf16.msra.mxu0 %v343
    %359 = vmatprep.subr.bf16.mxu0 0
    %360 = vmatpush1.bf16.msra.mxu0 0
    %361 = vmatprep.subr.bf16.mxu0 0
    %362 = vmatpush1.bf16.msra.mxu0 0
    %363 = vmatprep.subr.bf16.mxu0 0
    %364 = vmatpush1.bf16.msra.mxu0 0
    %365 = vmatprep.subr.bf16.mxu0 0
    %366 = vmatpush1.bf16.msra.mxu0 0
    %367 = vmatprep.subr.bf16.mxu0 0
    %368 = vmatpush1.bf16.msra.mxu0 0
    %369 = vmatprep.subr.bf16.mxu0 0
    %370 = vmatpush1.bf16.msra.mxu0 0
    %371 = vmatprep.subr.bf16.mxu0 0
    %372 = vmatpush1.bf16.msra.mxu0 0
    %373 = vmatprep.subr.bf16.mxu0 0
    %374 = vmatpush1.bf16.msra.mxu0 0
    %375 = vmatprep.subr.bf16.mxu0 0
    %376 = vmatpush1.bf16.msra.mxu0 0
    %377 = vmatprep.subr.bf16.mxu0 0
    %378 = vmatpush1.bf16.msra.mxu0 0
    %379 = vmatprep.subr.bf16.mxu0 0
    %380 = vmatpush1.bf16.msra.mxu0 0
    %381 = vmatprep.subr.bf16.mxu0 0
    %382 = vmatpush1.bf16.msra.mxu0 0
    %383 = vmatprep.mubr.bf16.mxu0 0
    %384 = vmatmul.mubr.bf16.gmra.mrb[0].mxu0 %v349
    %v385 = vpop.f32.mrb[0].mxu0
    %v386 = vadd.f32 %v322, %v385
    %v387 = vpop.f32.mrb[0].mxu0
    %v388 = vpop.f32.mrb[0].mxu0
    %v389 = vadd.f32 %v322, %v388
    %v390 = vpop.f32.mrb[0].mxu0
    %391 = vdwg.mxu0
    %v392 = vpack.c.bf16 %v220, %v220
    %v393 = vpack.c.bf16 %v223, %v223
    %v394 = vpack.c.bf16 %v303, %v303
    %v395 = vpack.c.bf16 %v306, %v306
    %v396 = vpack.c.bf16 %v386, %v386
    %v397 = vpack.c.bf16 %v389, %v389
    %vm398 = vcmask 64512
    %v400 = vsel %vm398, %v392, 0
    %v403 = vsel %vm398, %v394, 0
    %405 = vmatprep.subr.bf16.mxu0 0
    %406 = vmatpush1.bf16.xpose.msra.mxu0 %v403
    %407 = vmatprep.subr.bf16.mxu0 0
    %408 = vmatpush1.bf16.xpose.msra.mxu0 0
    %409 = vmatprep.subr.bf16.mxu0 0
    %410 = vmatpush1.bf16.xpose.msra.mxu0 0
    %411 = vmatprep.subr.bf16.mxu0 0
    %412 = vmatpush1.bf16.xpose.msra.mxu0 0
    %413 = vmatprep.subr.bf16.mxu0 0
    %414 = vmatpush1.bf16.xpose.msra.mxu0 0
    %415 = vmatprep.subr.bf16.mxu0 0
    %416 = vmatpush1.bf16.xpose.msra.mxu0 0
    %417 = vmatprep.subr.bf16.mxu0 0
    %418 = vmatpush1.bf16.xpose.msra.mxu0 0
    %419 = vmatprep.subr.bf16.mxu0 0
    %420 = vmatpush1.bf16.xpose.msra.mxu0 0
    %421 = vmatprep.subr.bf16.mxu0 0
    %422 = vmatpush1.bf16.xpose.msra.mxu0 0
    %423 = vmatprep.subr.bf16.mxu0 0
    %424 = vmatpush1.bf16.xpose.msra.mxu0 0
    %425 = vmatprep.subr.bf16.mxu0 0
    %426 = vmatpush1.bf16.xpose.msra.mxu0 0
    %427 = vmatprep.subr.bf16.mxu0 0
    %428 = vmatpush1.bf16.xpose.msra.mxu0 0
    %429 = vmatprep.subr.bf16.mxu0 0
    %430 = vmatpush1.bf16.xpose.msra.mxu0 0
    %431 = vmatprep.subr.bf16.mxu0 0
    %432 = vmatpush1.bf16.xpose.msra.mxu0 0
    %433 = vmatprep.subr.bf16.mxu0 0
    %434 = vmatpush1.bf16.xpose.msra.mxu0 0
    %435 = vmatprep.subr.bf16.mxu0 0
    %436 = vmatpush1.bf16.xpose.msra.mxu0 0
    %437 = vmatprep.mubr.bf16.mxu0 0
    %438 = vmatmul.mubr.bf16.gmra.mrb[0].mxu0 %v400
    %v439 = vpop.f32.mrb[0].mxu0
    %v440 = vadd.f32 0.0, %v439
    %v441 = vpop.f32.mrb[0].mxu0
    %v442 = vpop.f32.mrb[0].mxu0
    %v443 = vpop.f32.mrb[0].mxu0
    %444 = vdwg.mxu0
    %v446 = vsel %vm398, %v393, 0
    %v449 = vsel %vm398, %v395, 0
    %451 = vmatprep.subr.bf16.mxu0 0
    %452 = vmatpush1.bf16.xpose.msra.mxu0 %v449
    %453 = vmatprep.subr.bf16.mxu0 0
    %454 = vmatpush1.bf16.xpose.msra.mxu0 0
    %455 = vmatprep.subr.bf16.mxu0 0
    %456 = vmatpush1.bf16.xpose.msra.mxu0 0
    %457 = vmatprep.subr.bf16.mxu0 0
    %458 = vmatpush1.bf16.xpose.msra.mxu0 0
    %459 = vmatprep.subr.bf16.mxu0 0
    %460 = vmatpush1.bf16.xpose.msra.mxu0 0
    %461 = vmatprep.subr.bf16.mxu0 0
    %462 = vmatpush1.bf16.xpose.msra.mxu0 0
    %463 = vmatprep.subr.bf16.mxu0 0
    %464 = vmatpush1.bf16.xpose.msra.mxu0 0
    %465 = vmatprep.subr.bf16.mxu0 0
    %466 = vmatpush1.bf16.xpose.msra.mxu0 0
    %467 = vmatprep.subr.bf16.mxu0 0
    %468 = vmatpush1.bf16.xpose.msra.mxu0 0
    %469 = vmatprep.subr.bf16.mxu0 0
    %470 = vmatpush1.bf16.xpose.msra.mxu0 0
    %471 = vmatprep.subr.bf16.mxu0 0
    %472 = vmatpush1.bf16.xpose.msra.mxu0 0
    %473 = vmatprep.subr.bf16.mxu0 0
    %474 = vmatpush1.bf16.xpose.msra.mxu0 0
    %475 = vmatprep.subr.bf16.mxu0 0
    %476 = vmatpush1.bf16.xpose.msra.mxu0 0
    %477 = vmatprep.subr.bf16.mxu0 0
    %478 = vmatpush1.bf16.xpose.msra.mxu0 0
    %479 = vmatprep.subr.bf16.mxu0 0
    %480 = vmatpush1.bf16.xpose.msra.mxu0 0
    %481 = vmatprep.subr.bf16.mxu0 0
    %482 = vmatpush1.bf16.xpose.msra.mxu0 0
    %483 = vmatprep.mubr.bf16.mxu0 0
    %484 = vmatmul.mubr.bf16.gmra.mrb[0].mxu0 %v446
    %v485 = vpop.f32.mrb[0].mxu0
    %v486 = vadd.f32 0.0, %v485
    %v487 = vpop.f32.mrb[0].mxu0
    %v488 = vpop.f32.mrb[0].mxu0
    %v489 = vpop.f32.mrb[0].mxu0
    %490 = vdwg.mxu0
    %v491 = vsel %vm398, %v440, -inf
    %492 = vmax.xlane.f32.xlu0 %v491
    %v493 = vpop.xlane.xlu0 %492
    %v494 = vsel %vm398, %v486, -inf
    %495 = vmax.xlane.f32.xlu0 %v494
    %v496 = vpop.xlane.xlu0 %495
    %v497 = vsub.f32 %v440, %v493
    %v498 = vsub.f32 %v486, %v496
    %v499 = vmul.f32 %v497, 1.442695
    %v500 = vpow.pop %v499
    %v501 = vmul.f32 %v498, 1.442695
    %v502 = vpow.pop %v501
    %v503 = vsel %vm398, %v500, 0.0
    %504 = vadd.xlane.f32.xlu0 %v503
    %v505 = vpop.xlane.xlu0 %504
    %v506 = vsel %vm398, %v502, 0.0
    %507 = vadd.xlane.f32.xlu0 %v506
    %v508 = vpop.xlane.xlu0 %507
    %v509 = vrcp.pop %v505
    %v510 = vrcp.pop %v508
    %v511 = vmul.f32 %v500, %v509
    %v512 = vmul.f32 %v502, %v510
    %v513 = vpack.c.bf16 %v511, %v511
    %v514 = vpack.c.bf16 %v512, %v512
    %v516 = vsel %vm398, %v513, 0
    %vm518 = vcmask 1043456
    %v520 = vsel %vm518, %v396, 0
    %522 = vmatprep.subr.bf16.mxu0 0
    %523 = vmatpush1.bf16.msra.mxu0 %v520
    %524 = vmatprep.subr.bf16.mxu0 0
    %525 = vmatpush1.bf16.msra.mxu0 0
    %526 = vmatprep.subr.bf16.mxu0 0
    %527 = vmatpush1.bf16.msra.mxu0 0
    %528 = vmatprep.subr.bf16.mxu0 0
    %529 = vmatpush1.bf16.msra.mxu0 0
    %530 = vmatprep.subr.bf16.mxu0 0
    %531 = vmatpush1.bf16.msra.mxu0 0
    %532 = vmatprep.subr.bf16.mxu0 0
    %533 = vmatpush1.bf16.msra.mxu0 0
    %534 = vmatprep.subr.bf16.mxu0 0
    %535 = vmatpush1.bf16.msra.mxu0 0
    %536 = vmatprep.subr.bf16.mxu0 0
    %537 = vmatpush1.bf16.msra.mxu0 0
    %538 = vmatprep.subr.bf16.mxu0 0
    %539 = vmatpush1.bf16.msra.mxu0 0
    %540 = vmatprep.subr.bf16.mxu0 0
    %541 = vmatpush1.bf16.msra.mxu0 0
    %542 = vmatprep.subr.bf16.mxu0 0
    %543 = vmatpush1.bf16.msra.mxu0 0
    %544 = vmatprep.subr.bf16.mxu0 0
    %545 = vmatpush1.bf16.msra.mxu0 0
    %546 = vmatprep.subr.bf16.mxu0 0
    %547 = vmatpush1.bf16.msra.mxu0 0
    %548 = vmatprep.subr.bf16.mxu0 0
    %549 = vmatpush1.bf16.msra.mxu0 0
    %550 = vmatprep.subr.bf16.mxu0 0
    %551 = vmatpush1.bf16.msra.mxu0 0
    %552 = vmatprep.subr.bf16.mxu0 0
    %553 = vmatpush1.bf16.msra.mxu0 0
    %554 = vmatprep.mubr.bf16.mxu0 0
    %555 = vmatmul.mubr.bf16.gmra.mrb[0].mxu0 %v516
    %v556 = vpop.f32.mrb[0].mxu0
    %v557 = vadd.f32 0.0, %v556
    %v558 = vpop.f32.mrb[0].mxu0
    %v559 = vpop.f32.mrb[0].mxu0
    %v560 = vpop.f32.mrb[0].mxu0
    %561 = vdwg.mxu0
    %v563 = vsel %vm398, %v514, 0
    %v566 = vsel %vm518, %v397, 0
    %568 = vmatprep.subr.bf16.mxu0 0
    %569 = vmatpush1.bf16.msra.mxu0 %v566
    %570 = vmatprep.subr.bf16.mxu0 0
    %571 = vmatpush1.bf16.msra.mxu0 0
    %572 = vmatprep.subr.bf16.mxu0 0
    %573 = vmatpush1.bf16.msra.mxu0 0
    %574 = vmatprep.subr.bf16.mxu0 0
    %575 = vmatpush1.bf16.msra.mxu0 0
    %576 = vmatprep.subr.bf16.mxu0 0
    %577 = vmatpush1.bf16.msra.mxu0 0
    %578 = vmatprep.subr.bf16.mxu0 0
    %579 = vmatpush1.bf16.msra.mxu0 0
    %580 = vmatprep.subr.bf16.mxu0 0
    %581 = vmatpush1.bf16.msra.mxu0 0
    %582 = vmatprep.subr.bf16.mxu0 0
    %583 = vmatpush1.bf16.msra.mxu0 0
    %584 = vmatprep.subr.bf16.mxu0 0
    %585 = vmatpush1.bf16.msra.mxu0 0
    %586 = vmatprep.subr.bf16.mxu0 0
    %587 = vmatpush1.bf16.msra.mxu0 0
    %588 = vmatprep.subr.bf16.mxu0 0
    %589 = vmatpush1.bf16.msra.mxu0 0
    %590 = vmatprep.subr.bf16.mxu0 0
    %591 = vmatpush1.bf16.msra.mxu0 0
    %592 = vmatprep.subr.bf16.mxu0 0
    %593 = vmatpush1.bf16.msra.mxu0 0
    %594 = vmatprep.subr.bf16.mxu0 0
    %595 = vmatpush1.bf16.msra.mxu0 0
    %596 = vmatprep.subr.bf16.mxu0 0
    %597 = vmatpush1.bf16.msra.mxu0 0
    %598 = vmatprep.subr.bf16.mxu0 0
    %599 = vmatpush1.bf16.msra.mxu0 0
    %600 = vmatprep.mubr.bf16.mxu0 0
    %601 = vmatmul.mubr.bf16.gmra.mrb[0].mxu0 %v563
    %v602 = vpop.f32.mrb[0].mxu0
    %v603 = vadd.f32 0.0, %v602
    %v604 = vpop.f32.mrb[0].mxu0
    %v605 = vpop.f32.mrb[0].mxu0
    %v606 = vpop.f32.mrb[0].mxu0
    %607 = vdwg.mxu0
    %v608 = vpack.c.bf16 %v603, %v557
    %609 = vst.msk [vmem:[#allocation2] sm:$0xff] %vm398, %v608
    %611 = vrot.lane.b32.xlu0 %v392, 120
    %v612 = vpop.permute.xlu0 %611
    %614 = vrot.lane.b32.xlu0 %v394, 120
    %v615 = vpop.permute.xlu0 %614
    %v617 = vsel %vm398, %v612, 0
    %v620 = vsel %vm398, %v615, 0
    %622 = vmatprep.subr.bf16.mxu0 0
    %623 = vmatpush1.bf16.xpose.msra.mxu0 %v620
    %624 = vmatprep.subr.bf16.mxu0 0
    %625 = vmatpush1.bf16.xpose.msra.mxu0 0
    %626 = vmatprep.subr.bf16.mxu0 0
    %627 = vmatpush1.bf16.xpose.msra.mxu0 0
    %628 = vmatprep.subr.bf16.mxu0 0
    %629 = vmatpush1.bf16.xpose.msra.mxu0 0
    %630 = vmatprep.subr.bf16.mxu0 0
    %631 = vmatpush1.bf16.xpose.msra.mxu0 0
    %632 = vmatprep.subr.bf16.mxu0 0
    %633 = vmatpush1.bf16.xpose.msra.mxu0 0
    %634 = vmatprep.subr.bf16.mxu0 0
    %635 = vmatpush1.bf16.xpose.msra.mxu0 0
    %636 = vmatprep.subr.bf16.mxu0 0
    %637 = vmatpush1.bf16.xpose.msra.mxu0 0
    %638 = vmatprep.subr.bf16.mxu0 0
    %639 = vmatpush1.bf16.xpose.msra.mxu0 0
    %640 = vmatprep.subr.bf16.mxu0 0
    %641 = vmatpush1.bf16.xpose.msra.mxu0 0
    %642 = vmatprep.subr.bf16.mxu0 0
    %643 = vmatpush1.bf16.xpose.msra.mxu0 0
    %644 = vmatprep.subr.bf16.mxu0 0
    %645 = vmatpush1.bf16.xpose.msra.mxu0 0
    %646 = vmatprep.subr.bf16.mxu0 0
    %647 = vmatpush1.bf16.xpose.msra.mxu0 0
    %648 = vmatprep.subr.bf16.mxu0 0
    %649 = vmatpush1.bf16.xpose.msra.mxu0 0
    %650 = vmatprep.subr.bf16.mxu0 0
    %651 = vmatpush1.bf16.xpose.msra.mxu0 0
    %652 = vmatprep.subr.bf16.mxu0 0
    %653 = vmatpush1.bf16.xpose.msra.mxu0 0
    %654 = vmatprep.mubr.bf16.mxu0 0
    %655 = vmatmul.mubr.bf16.gmra.mrb[0].mxu0 %v617
    %v656 = vpop.f32.mrb[0].mxu0
    %v657 = vadd.f32 0.0, %v656
    %v658 = vpop.f32.mrb[0].mxu0
    %v659 = vpop.f32.mrb[0].mxu0
    %v660 = vpop.f32.mrb[0].mxu0
    %661 = vdwg.mxu0
    %663 = vrot.lane.b32.xlu0 %v393, 120
    %v664 = vpop.permute.xlu0 %663
    %666 = vrot.lane.b32.xlu0 %v395, 120
    %v667 = vpop.permute.xlu0 %666
    %v669 = vsel %vm398, %v664, 0
    %v672 = vsel %vm398, %v667, 0
    %674 = vmatprep.subr.bf16.mxu0 0
    %675 = vmatpush1.bf16.xpose.msra.mxu0 %v672
    %676 = vmatprep.subr.bf16.mxu0 0
    %677 = vmatpush1.bf16.xpose.msra.mxu0 0
    %678 = vmatprep.subr.bf16.mxu0 0
    %679 = vmatpush1.bf16.xpose.msra.mxu0 0
    %680 = vmatprep.subr.bf16.mxu0 0
    %681 = vmatpush1.bf16.xpose.msra.mxu0 0
    %682 = vmatprep.subr.bf16.mxu0 0
    %683 = vmatpush1.bf16.xpose.msra.mxu0 0
    %684 = vmatprep.subr.bf16.mxu0 0
    %685 = vmatpush1.bf16.xpose.msra.mxu0 0
    %686 = vmatprep.subr.bf16.mxu0 0
    %687 = vmatpush1.bf16.xpose.msra.mxu0 0
    %688 = vmatprep.subr.bf16.mxu0 0
    %689 = vmatpush1.bf16.xpose.msra.mxu0 0
    %690 = vmatprep.subr.bf16.mxu0 0
    %691 = vmatpush1.bf16.xpose.msra.mxu0 0
    %692 = vmatprep.subr.bf16.mxu0 0
    %693 = vmatpush1.bf16.xpose.msra.mxu0 0
    %694 = vmatprep.subr.bf16.mxu0 0
    %695 = vmatpush1.bf16.xpose.msra.mxu0 0
    %696 = vmatprep.subr.bf16.mxu0 0
    %697 = vmatpush1.bf16.xpose.msra.mxu0 0
    %698 = vmatprep.subr.bf16.mxu0 0
    %699 = vmatpush1.bf16.xpose.msra.mxu0 0
    %700 = vmatprep.subr.bf16.mxu0 0
    %701 = vmatpush1.bf16.xpose.msra.mxu0 0
    %702 = vmatprep.subr.bf16.mxu0 0
    %703 = vmatpush1.bf16.xpose.msra.mxu0 0
    %704 = vmatprep.subr.bf16.mxu0 0
    %705 = vmatpush1.bf16.xpose.msra.mxu0 0
    %706 = vmatprep.mubr.bf16.mxu0 0
    %707 = vmatmul.mubr.bf16.gmra.mrb[0].mxu0 %v669
    %v708 = vpop.f32.mrb[0].mxu0
    %v709 = vadd.f32 0.0, %v708
    %v710 = vpop.f32.mrb[0].mxu0
    %v711 = vpop.f32.mrb[0].mxu0
    %v712 = vpop.f32.mrb[0].mxu0
    %713 = vdwg.mxu0
    %v714 = vsel %vm398, %v657, -inf
    %715 = vmax.xlane.f32.xlu0 %v714
    %v716 = vpop.xlane.xlu0 %715
    %v717 = vsel %vm398, %v709, -inf
    %718 = vmax.xlane.f32.xlu0 %v717
    %v719 = vpop.xlane.xlu0 %718
    %v720 = vsub.f32 %v657, %v716
    %v721 = vsub.f32 %v709, %v719
    %v722 = vmul.f32 %v720, 1.442695
    %v723 = vpow.pop %v722
    %v724 = vmul.f32 %v721, 1.442695
    %v725 = vpow.pop %v724
    %v726 = vsel %vm398, %v723, 0.0
    %727 = vadd.xlane.f32.xlu0 %v726
    %v728 = vpop.xlane.xlu0 %727
    %v729 = vsel %vm398, %v725, 0.0
    %730 = vadd.xlane.f32.xlu0 %v729
    %v731 = vpop.xlane.xlu0 %730
    %v732 = vrcp.pop %v728
    %v733 = vrcp.pop %v731
    %v734 = vmul.f32 %v723, %v732
    %v735 = vmul.f32 %v725, %v733
    %v736 = vpack.c.bf16 %v734, %v734
    %v737 = vpack.c.bf16 %v735, %v735
    %739 = vrot.lane.b32.xlu0 %v396, 120
    %v740 = vpop.permute.xlu0 %739
    %v742 = vsel %vm398, %v736, 0
    %v745 = vsel %vm518, %v740, 0
    %747 = vmatprep.subr.bf16.mxu0 0
    %748 = vmatpush1.bf16.msra.mxu0 %v745
    %749 = vmatprep.subr.bf16.mxu0 0
    %750 = vmatpush1.bf16.msra.mxu0 0
    %751 = vmatprep.subr.bf16.mxu0 0
    %752 = vmatpush1.bf16.msra.mxu0 0
    %753 = vmatprep.subr.bf16.mxu0 0
    %754 = vmatpush1.bf16.msra.mxu0 0
    %755 = vmatprep.subr.bf16.mxu0 0
    %756 = vmatpush1.bf16.msra.mxu0 0
    %757 = vmatprep.subr.bf16.mxu0 0
    %758 = vmatpush1.bf16.msra.mxu0 0
    %759 = vmatprep.subr.bf16.mxu0 0
    %760 = vmatpush1.bf16.msra.mxu0 0
    %761 = vmatprep.subr.bf16.mxu0 0
    %762 = vmatpush1.bf16.msra.mxu0 0
    %763 = vmatprep.subr.bf16.mxu0 0
    %764 = vmatpush1.bf16.msra.mxu0 0
    %765 = vmatprep.subr.bf16.mxu0 0
    %766 = vmatpush1.bf16.msra.mxu0 0
    %767 = vmatprep.subr.bf16.mxu0 0
    %768 = vmatpush1.bf16.msra.mxu0 0
    %769 = vmatprep.subr.bf16.mxu0 0
    %770 = vmatpush1.bf16.msra.mxu0 0
    %771 = vmatprep.subr.bf16.mxu0 0
    %772 = vmatpush1.bf16.msra.mxu0 0
    %773 = vmatprep.subr.bf16.mxu0 0
    %774 = vmatpush1.bf16.msra.mxu0 0
    %775 = vmatprep.subr.bf16.mxu0 0
    %776 = vmatpush1.bf16.msra.mxu0 0
    %777 = vmatprep.subr.bf16.mxu0 0
    %778 = vmatpush1.bf16.msra.mxu0 0
    %779 = vmatprep.mubr.bf16.mxu0 0
    %780 = vmatmul.mubr.bf16.gmra.mrb[0].mxu0 %v742
    %v781 = vpop.f32.mrb[0].mxu0
    %v782 = vadd.f32 0.0, %v781
    %v783 = vpop.f32.mrb[0].mxu0
    %v784 = vpop.f32.mrb[0].mxu0
    %v785 = vpop.f32.mrb[0].mxu0
    %786 = vdwg.mxu0
    %788 = vrot.lane.b32.xlu0 %v397, 120
    %v789 = vpop.permute.xlu0 %788
    %v791 = vsel %vm398, %v737, 0
    %v794 = vsel %vm518, %v789, 0
    %796 = vmatprep.subr.bf16.mxu0 0
    %797 = vmatpush1.bf16.msra.mxu0 %v794
    %798 = vmatprep.subr.bf16.mxu0 0
    %799 = vmatpush1.bf16.msra.mxu0 0
    %800 = vmatprep.subr.bf16.mxu0 0
    %801 = vmatpush1.bf16.msra.mxu0 0
    %802 = vmatprep.subr.bf16.mxu0 0
    %803 = vmatpush1.bf16.msra.mxu0 0
    %804 = vmatprep.subr.bf16.mxu0 0
    %805 = vmatpush1.bf16.msra.mxu0 0
    %806 = vmatprep.subr.bf16.mxu0 0
    %807 = vmatpush1.bf16.msra.mxu0 0
    %808 = vmatprep.subr.bf16.mxu0 0
    %809 = vmatpush1.bf16.msra.mxu0 0
    %810 = vmatprep.subr.bf16.mxu0 0
    %811 = vmatpush1.bf16.msra.mxu0 0
    %812 = vmatprep.subr.bf16.mxu0 0
    %813 = vmatpush1.bf16.msra.mxu0 0
    %814 = vmatprep.subr.bf16.mxu0 0
    %815 = vmatpush1.bf16.msra.mxu0 0
    %816 = vmatprep.subr.bf16.mxu0 0
    %817 = vmatpush1.bf16.msra.mxu0 0
    %818 = vmatprep.subr.bf16.mxu0 0
    %819 = vmatpush1.bf16.msra.mxu0 0
    %820 = vmatprep.subr.bf16.mxu0 0
    %821 = vmatpush1.bf16.msra.mxu0 0
    %822 = vmatprep.subr.bf16.mxu0 0
    %823 = vmatpush1.bf16.msra.mxu0 0
    %824 = vmatprep.subr.bf16.mxu0 0
    %825 = vmatpush1.bf16.msra.mxu0 0
    %826 = vmatprep.subr.bf16.mxu0 0
    %827 = vmatpush1.bf16.msra.mxu0 0
    %828 = vmatprep.mubr.bf16.mxu0 0
    %829 = vmatmul.mubr.bf16.gmra.mrb[0].mxu0 %v791
    %v830 = vpop.f32.mrb[0].mxu0
    %v831 = vadd.f32 0.0, %v830
    %v832 = vpop.f32.mrb[0].mxu0
    %v833 = vpop.f32.mrb[0].mxu0
    %v834 = vpop.f32.mrb[0].mxu0
    %835 = vdwg.mxu0
    %v836 = vpack.c.bf16 %v831, %v782
    %838 = vrot.lane.b32.xlu0 %v836, 8
    %v839 = vpop.permute.xlu0 %838
    %vm841 = vcmask 130112
    %842 = vst.msk [vmem:[#allocation2] sm:$0xff] %vm841, %v839
    %843 = vrot.lane.b32.xlu0 %v392, 112
    %v844 = vpop.permute.xlu0 %843
    %845 = vrot.lane.b32.xlu0 %v394, 112
    %v846 = vpop.permute.xlu0 %845
    %v848 = vsel %vm398, %v844, 0
    %v851 = vsel %vm398, %v846, 0
    %853 = vmatprep.subr.bf16.mxu0 0
    %854 = vmatpush1.bf16.xpose.msra.mxu0 %v851
    %855 = vmatprep.subr.bf16.mxu0 0
    %856 = vmatpush1.bf16.xpose.msra.mxu0 0
    %857 = vmatprep.subr.bf16.mxu0 0
    %858 = vmatpush1.bf16.xpose.msra.mxu0 0
    %859 = vmatprep.subr.bf16.mxu0 0
    %860 = vmatpush1.bf16.xpose.msra.mxu0 0
    %861 = vmatprep.subr.bf16.mxu0 0
    %862 = vmatpush1.bf16.xpose.msra.mxu0 0
    %863 = vmatprep.subr.bf16.mxu0 0
    %864 = vmatpush1.bf16.xpose.msra.mxu0 0
    %865 = vmatprep.subr.bf16.mxu0 0
    %866 = vmatpush1.bf16.xpose.msra.mxu0 0
    %867 = vmatprep.subr.bf16.mxu0 0
    %868 = vmatpush1.bf16.xpose.msra.mxu0 0
    %869 = vmatprep.subr.bf16.mxu0 0
    %870 = vmatpush1.bf16.xpose.msra.mxu0 0
    %871 = vmatprep.subr.bf16.mxu0 0
    %872 = vmatpush1.bf16.xpose.msra.mxu0 0
    %873 = vmatprep.subr.bf16.mxu0 0
    %874 = vmatpush1.bf16.xpose.msra.mxu0 0
    %875 = vmatprep.subr.bf16.mxu0 0
    %876 = vmatpush1.bf16.xpose.msra.mxu0 0
    %877 = vmatprep.subr.bf16.mxu0 0
    %878 = vmatpush1.bf16.xpose.msra.mxu0 0
    %879 = vmatprep.subr.bf16.mxu0 0
    %880 = vmatpush1.bf16.xpose.msra.mxu0 0
    %881 = vmatprep.subr.bf16.mxu0 0
    %882 = vmatpush1.bf16.xpose.msra.mxu0 0
    %883 = vmatprep.subr.bf16.mxu0 0
    %884 = vmatpush1.bf16.xpose.msra.mxu0 0
    %885 = vmatprep.mubr.bf16.mxu0 0
    %886 = vmatmul.mubr.bf16.gmra.mrb[0].mxu0 %v848
    %v887 = vpop.f32.mrb[0].mxu0
    %v888 = vadd.f32 0.0, %v887
    %v889 = vpop.f32.mrb[0].mxu0
    %v890 = vpop.f32.mrb[0].mxu0
    %v891 = vpop.f32.mrb[0].mxu0
    %892 = vdwg.mxu0
    %893 = vrot.lane.b32.xlu0 %v393, 112
    %v894 = vpop.permute.xlu0 %893
    %895 = vrot.lane.b32.xlu0 %v395, 112
    %v896 = vpop.permute.xlu0 %895
    %v898 = vsel %vm398, %v894, 0
    %v901 = vsel %vm398, %v896, 0
    %903 = vmatprep.subr.bf16.mxu0 0
    %904 = vmatpush1.bf16.xpose.msra.mxu0 %v901
    %905 = vmatprep.subr.bf16.mxu0 0
    %906 = vmatpush1.bf16.xpose.msra.mxu0 0
    %907 = vmatprep.subr.bf16.mxu0 0
    %908 = vmatpush1.bf16.xpose.msra.mxu0 0
    %909 = vmatprep.subr.bf16.mxu0 0
    %910 = vmatpush1.bf16.xpose.msra.mxu0 0
    %911 = vmatprep.subr.bf16.mxu0 0
    %912 = vmatpush1.bf16.xpose.msra.mxu0 0
    %913 = vmatprep.subr.bf16.mxu0 0
    %914 = vmatpush1.bf16.xpose.msra.mxu0 0
    %915 = vmatprep.subr.bf16.mxu0 0
    %916 = vmatpush1.bf16.xpose.msra.mxu0 0
    %917 = vmatprep.subr.bf16.mxu0 0
    %918 = vmatpush1.bf16.xpose.msra.mxu0 0
    %919 = vmatprep.subr.bf16.mxu0 0
    %920 = vmatpush1.bf16.xpose.msra.mxu0 0
    %921 = vmatprep.subr.bf16.mxu0 0
    %922 = vmatpush1.bf16.xpose.msra.mxu0 0
    %923 = vmatprep.subr.bf16.mxu0 0
    %924 = vmatpush1.bf16.xpose.msra.mxu0 0
    %925 = vmatprep.subr.bf16.mxu0 0
    %926 = vmatpush1.bf16.xpose.msra.mxu0 0
    %927 = vmatprep.subr.bf16.mxu0 0
    %928 = vmatpush1.bf16.xpose.msra.mxu0 0
    %929 = vmatprep.subr.bf16.mxu0 0
    %930 = vmatpush1.bf16.xpose.msra.mxu0 0
    %931 = vmatprep.subr.bf16.mxu0 0
    %932 = vmatpush1.bf16.xpose.msra.mxu0 0
    %933 = vmatprep.subr.bf16.mxu0 0
    %934 = vmatpush1.bf16.xpose.msra.mxu0 0
    %935 = vmatprep.mubr.bf16.mxu0 0
    %936 = vmatmul.mubr.bf16.gmra.mrb[0].mxu0 %v898
    %v937 = vpop.f32.mrb[0].mxu0
    %v938 = vadd.f32 0.0, %v937
    %v939 = vpop.f32.mrb[0].mxu0
    %v940 = vpop.f32.mrb[0].mxu0
    %v941 = vpop.f32.mrb[0].mxu0
    %942 = vdwg.mxu0
    %v943 = vsel %vm398, %v888, -inf
    %944 = vmax.xlane.f32.xlu0 %v943
    %v945 = vpop.xlane.xlu0 %944
    %v946 = vsel %vm398, %v938, -inf
    %947 = vmax.xlane.f32.xlu0 %v946
    %v948 = vpop.xlane.xlu0 %947
    %v949 = vsub.f32 %v888, %v945
    %v950 = vsub.f32 %v938, %v948
    %v951 = vmul.f32 %v949, 1.442695
    %v952 = vpow.pop %v951
    %v953 = vmul.f32 %v950, 1.442695
    %v954 = vpow.pop %v953
    %v955 = vsel %vm398, %v952, 0.0
    %956 = vadd.xlane.f32.xlu0 %v955
    %v957 = vpop.xlane.xlu0 %956
    %v958 = vsel %vm398, %v954, 0.0
    %959 = vadd.xlane.f32.xlu0 %v958
    %v960 = vpop.xlane.xlu0 %959
    %v961 = vrcp.pop %v957
    %v962 = vrcp.pop %v960
    %v963 = vmul.f32 %v952, %v961
    %v964 = vmul.f32 %v954, %v962
    %v965 = vpack.c.bf16 %v963, %v963
    %v966 = vpack.c.bf16 %v964, %v964
    %967 = vrot.lane.b32.xlu0 %v396, 112
    %v968 = vpop.permute.xlu0 %967
    %v970 = vsel %vm398, %v965, 0
    %v973 = vsel %vm518, %v968, 0
    %975 = vmatprep.subr.bf16.mxu0 0
    %976 = vmatpush1.bf16.msra.mxu0 %v973
    %977 = vmatprep.subr.bf16.mxu0 0
    %978 = vmatpush1.bf16.msra.mxu0 0
    %979 = vmatprep.subr.bf16.mxu0 0
    %980 = vmatpush1.bf16.msra.mxu0 0
    %981 = vmatprep.subr.bf16.mxu0 0
    %982 = vmatpush1.bf16.msra.mxu0 0
    %983 = vmatprep.subr.bf16.mxu0 0
    %984 = vmatpush1.bf16.msra.mxu0 0
    %985 = vmatprep.subr.bf16.mxu0 0
    %986 = vmatpush1.bf16.msra.mxu0 0
    %987 = vmatprep.subr.bf16.mxu0 0
    %988 = vmatpush1.bf16.msra.mxu0 0
    %989 = vmatprep.subr.bf16.mxu0 0
    %990 = vmatpush1.bf16.msra.mxu0 0
    %991 = vmatprep.subr.bf16.mxu0 0
    %992 = vmatpush1.bf16.msra.mxu0 0
    %993 = vmatprep.subr.bf16.mxu0 0
    %994 = vmatpush1.bf16.msra.mxu0 0
    %995 = vmatprep.subr.bf16.mxu0 0
    %996 = vmatpush1.bf16.msra.mxu0 0
    %997 = vmatprep.subr.bf16.mxu0 0
    %998 = vmatpush1.bf16.msra.mxu0 0
    %999 = vmatprep.subr.bf16.mxu0 0
    %1000 = vmatpush1.bf16.msra.mxu0 0
    %1001 = vmatprep.subr.bf16.mxu0 0
    %1002 = vmatpush1.bf16.msra.mxu0 0
    %1003 = vmatprep.subr.bf16.mxu0 0
    %1004 = vmatpush1.bf16.msra.mxu0 0
    %1005 = vmatprep.subr.bf16.mxu0 0
    %1006 = vmatpush1.bf16.msra.mxu0 0
    %1007 = vmatprep.mubr.bf16.mxu0 0
    %1008 = vmatmul.mubr.bf16.gmra.mrb[0].mxu0 %v970
    %v1009 = vpop.f32.mrb[0].mxu0
    %v1010 = vadd.f32 0.0, %v1009
    %v1011 = vpop.f32.mrb[0].mxu0
    %v1012 = vpop.f32.mrb[0].mxu0
    %v1013 = vpop.f32.mrb[0].mxu0
    %1014 = vdwg.mxu0
    %1015 = vrot.lane.b32.xlu0 %v397, 112
    %v1016 = vpop.permute.xlu0 %1015
    %v1018 = vsel %vm398, %v966, 0
    %v1021 = vsel %vm518, %v1016, 0
    %1023 = vmatprep.subr.bf16.mxu0 0
    %1024 = vmatpush1.bf16.msra.mxu0 %v1021
    %1025 = vmatprep.subr.bf16.mxu0 0
    %1026 = vmatpush1.bf16.msra.mxu0 0
    %1027 = vmatprep.subr.bf16.mxu0 0
    %1028 = vmatpush1.bf16.msra.mxu0 0
    %1029 = vmatprep.subr.bf16.mxu0 0
    %1030 = vmatpush1.bf16.msra.mxu0 0
    %1031 = vmatprep.subr.bf16.mxu0 0
    %1032 = vmatpush1.bf16.msra.mxu0 0
    %1033 = vmatprep.subr.bf16.mxu0 0
    %1034 = vmatpush1.bf16.msra.mxu0 0
    %1035 = vmatprep.subr.bf16.mxu0 0
    %1036 = vmatpush1.bf16.msra.mxu0 0
    %1037 = vmatprep.subr.bf16.mxu0 0
    %1038 = vmatpush1.bf16.msra.mxu0 0
    %1039 = vmatprep.subr.bf16.mxu0 0
    %1040 = vmatpush1.bf16.msra.mxu0 0
    %1041 = vmatprep.subr.bf16.mxu0 0
    %1042 = vmatpush1.bf16.msra.mxu0 0
    %1043 = vmatprep.subr.bf16.mxu0 0
    %1044 = vmatpush1.bf16.msra.mxu0 0
    %1045 = vmatprep.subr.bf16.mxu0 0
    %1046 = vmatpush1.bf16.msra.mxu0 0
    %1047 = vmatprep.subr.bf16.mxu0 0
    %1048 = vmatpush1.bf16.msra.mxu0 0
    %1049 = vmatprep.subr.bf16.mxu0 0
    %1050 = vmatpush1.bf16.msra.mxu0 0
    %1051 = vmatprep.subr.bf16.mxu0 0
    %1052 = vmatpush1.bf16.msra.mxu0 0
    %1053 = vmatprep.subr.bf16.mxu0 0
    %1054 = vmatpush1.bf16.msra.mxu0 0
    %1055 = vmatprep.mubr.bf16.mxu0 0
    %1056 = vmatmul.mubr.bf16.gmra.mrb[0].mxu0 %v1018
    %v1057 = vpop.f32.mrb[0].mxu0
    %v1058 = vadd.f32 0.0, %v1057
    %v1059 = vpop.f32.mrb[0].mxu0
    %v1060 = vpop.f32.mrb[0].mxu0
    %v1061 = vpop.f32.mrb[0].mxu0
    %1062 = vdwg.mxu0
    %v1063 = vpack.c.bf16 %v1058, %v1010
    %1065 = vrot.lane.b32.xlu0 %v1063, 16
    %v1066 = vpop.permute.xlu0 %1065
    %vm1068 = vcmask 195712
    %1069 = vst.msk [vmem:[#allocation2] sm:$0xff] %vm1068, %v1066
    %1070 = vrot.lane.b32.xlu0 %v392, 104
    %v1071 = vpop.permute.xlu0 %1070
    %1072 = vrot.lane.b32.xlu0 %v394, 104
    %v1073 = vpop.permute.xlu0 %1072
    %v1075 = vsel %vm398, %v1071, 0
    %v1078 = vsel %vm398, %v1073, 0
    %1080 = vmatprep.subr.bf16.mxu0 0
    %1081 = vmatpush1.bf16.xpose.msra.mxu0 %v1078
    %1082 = vmatprep.subr.bf16.mxu0 0
    %1083 = vmatpush1.bf16.xpose.msra.mxu0 0
    %1084 = vmatprep.subr.bf16.mxu0 0
    %1085 = vmatpush1.bf16.xpose.msra.mxu0 0
    %1086 = vmatprep.subr.bf16.mxu0 0
    %1087 = vmatpush1.bf16.xpose.msra.mxu0 0
    %1088 = vmatprep.subr.bf16.mxu0 0
    %1089 = vmatpush1.bf16.xpose.msra.mxu0 0
    %1090 = vmatprep.subr.bf16.mxu0 0
    %1091 = vmatpush1.bf16.xpose.msra.mxu0 0
    %1092 = vmatprep.subr.bf16.mxu0 0
    %1093 = vmatpush1.bf16.xpose.msra.mxu0 0
    %1094 = vmatprep.subr.bf16.mxu0 0
    %1095 = vmatpush1.bf16.xpose.msra.mxu0 0
    %1096 = vmatprep.subr.bf16.mxu0 0
    %1097 = vmatpush1.bf16.xpose.msra.mxu0 0
    %1098 = vmatprep.subr.bf16.mxu0 0
    %1099 = vmatpush1.bf16.xpose.msra.mxu0 0
    %1100 = vmatprep.subr.bf16.mxu0 0
    %1101 = vmatpush1.bf16.xpose.msra.mxu0 0
    %1102 = vmatprep.subr.bf16.mxu0 0
    %1103 = vmatpush1.bf16.xpose.msra.mxu0 0
    %1104 = vmatprep.subr.bf16.mxu0 0
    %1105 = vmatpush1.bf16.xpose.msra.mxu0 0
    %1106 = vmatprep.subr.bf16.mxu0 0
    %1107 = vmatpush1.bf16.xpose.msra.mxu0 0
    %1108 = vmatprep.subr.bf16.mxu0 0
    %1109 = vmatpush1.bf16.xpose.msra.mxu0 0
    %1110 = vmatprep.subr.bf16.mxu0 0
    %1111 = vmatpush1.bf16.xpose.msra.mxu0 0
    %1112 = vmatprep.mubr.bf16.mxu0 0
    %1113 = vmatmul.mubr.bf16.gmra.mrb[0].mxu0 %v1075
    %v1114 = vpop.f32.mrb[0].mxu0
    %v1115 = vadd.f32 0.0, %v1114
    %v1116 = vpop.f32.mrb[0].mxu0
    %v1117 = vpop.f32.mrb[0].mxu0
    %v1118 = vpop.f32.mrb[0].mxu0
    %1119 = vdwg.mxu0
    %1120 = vrot.lane.b32.xlu0 %v393, 104
    %v1121 = vpop.permute.xlu0 %1120
    %1122 = vrot.lane.b32.xlu0 %v395, 104
    %v1123 = vpop.permute.xlu0 %1122
    %v1125 = vsel %vm398, %v1121, 0
    %v1128 = vsel %vm398, %v1123, 0
    %1130 = vmatprep.subr.bf16.mxu0 0
    %1131 = vmatpush1.bf16.xpose.msra.mxu0 %v1128
    %1132 = vmatprep.subr.bf16.mxu0 0
    %1133 = vmatpush1.bf16.xpose.msra.mxu0 0
    %1134 = vmatprep.subr.bf16.mxu0 0
    %1135 = vmatpush1.bf16.xpose.msra.mxu0 0
    %1136 = vmatprep.subr.bf16.mxu0 0
    %1137 = vmatpush1.bf16.xpose.msra.mxu0 0
    %1138 = vmatprep.subr.bf16.mxu0 0
    %1139 = vmatpush1.bf16.xpose.msra.mxu0 0
    %1140 = vmatprep.subr.bf16.mxu0 0
    %1141 = vmatpush1.bf16.xpose.msra.mxu0 0
    %1142 = vmatprep.subr.bf16.mxu0 0
    %1143 = vmatpush1.bf16.xpose.msra.mxu0 0
    %1144 = vmatprep.subr.bf16.mxu0 0
    %1145 = vmatpush1.bf16.xpose.msra.mxu0 0
    %1146 = vmatprep.subr.bf16.mxu0 0
    %1147 = vmatpush1.bf16.xpose.msra.mxu0 0
    %1148 = vmatprep.subr.bf16.mxu0 0
    %1149 = vmatpush1.bf16.xpose.msra.mxu0 0
    %1150 = vmatprep.subr.bf16.mxu0 0
    %1151 = vmatpush1.bf16.xpose.msra.mxu0 0
    %1152 = vmatprep.subr.bf16.mxu0 0
    %1153 = vmatpush1.bf16.xpose.msra.mxu0 0
    %1154 = vmatprep.subr.bf16.mxu0 0
    %1155 = vmatpush1.bf16.xpose.msra.mxu0 0
    %1156 = vmatprep.subr.bf16.mxu0 0
    %1157 = vmatpush1.bf16.xpose.msra.mxu0 0
    %1158 = vmatprep.subr.bf16.mxu0 0
    %1159 = vmatpush1.bf16.xpose.msra.mxu0 0
    %1160 = vmatprep.subr.bf16.mxu0 0
    %1161 = vmatpush1.bf16.xpose.msra.mxu0 0
    %1162 = vmatprep.mubr.bf16.mxu0 0
    %1163 = vmatmul.mubr.bf16.gmra.mrb[0].mxu0 %v1125
    %v1164 = vpop.f32.mrb[0].mxu0
    %v1165 = vadd.f32 0.0, %v1164
    %v1166 = vpop.f32.mrb[0].mxu0
    %v1167 = vpop.f32.mrb[0].mxu0
    %v1168 = vpop.f32.mrb[0].mxu0
    %1169 = vdwg.mxu0
    %v1170 = vsel %vm398, %v1115, -inf
    %1171 = vmax.xlane.f32.xlu0 %v1170
    %v1172 = vpop.xlane.xlu0 %1171
    %v1173 = vsel %vm398, %v1165, -inf
    %1174 = vmax.xlane.f32.xlu0 %v1173
    %v1175 = vpop.xlane.xlu0 %1174
    %v1176 = vsub.f32 %v1115, %v1172
    %v1177 = vsub.f32 %v1165, %v1175
    %v1178 = vmul.f32 %v1176, 1.442695
    %v1179 = vpow.pop %v1178
    %v1180 = vmul.f32 %v1177, 1.442695
    %v1181 = vpow.pop %v1180
    %v1182 = vsel %vm398, %v1179, 0.0
    %1183 = vadd.xlane.f32.xlu0 %v1182
    %v1184 = vpop.xlane.xlu0 %1183
    %v1185 = vsel %vm398, %v1181, 0.0
    %1186 = vadd.xlane.f32.xlu0 %v1185
    %v1187 = vpop.xlane.xlu0 %1186
    %v1188 = vrcp.pop %v1184
    %v1189 = vrcp.pop %v1187
    %v1190 = vmul.f32 %v1179, %v1188
    %v1191 = vmul.f32 %v1181, %v1189
    %v1192 = vpack.c.bf16 %v1190, %v1190
    %v1193 = vpack.c.bf16 %v1191, %v1191
    %1194 = vrot.lane.b32.xlu0 %v396, 104
    %v1195 = vpop.permute.xlu0 %1194
    %v1197 = vsel %vm398, %v1192, 0
    %v1200 = vsel %vm518, %v1195, 0
    %1202 = vmatprep.subr.bf16.mxu0 0
    %1203 = vmatpush1.bf16.msra.mxu0 %v1200
    %1204 = vmatprep.subr.bf16.mxu0 0
    %1205 = vmatpush1.bf16.msra.mxu0 0
    %1206 = vmatprep.subr.bf16.mxu0 0
    %1207 = vmatpush1.bf16.msra.mxu0 0
    %1208 = vmatprep.subr.bf16.mxu0 0
    %1209 = vmatpush1.bf16.msra.mxu0 0
    %1210 = vmatprep.subr.bf16.mxu0 0
    %1211 = vmatpush1.bf16.msra.mxu0 0
    %1212 = vmatprep.subr.bf16.mxu0 0
    %1213 = vmatpush1.bf16.msra.mxu0 0
    %1214 = vmatprep.subr.bf16.mxu0 0
    %1215 = vmatpush1.bf16.msra.mxu0 0
    %1216 = vmatprep.subr.bf16.mxu0 0
    %1217 = vmatpush1.bf16.msra.mxu0 0
    %1218 = vmatprep.subr.bf16.mxu0 0
    %1219 = vmatpush1.bf16.msra.mxu0 0
    %1220 = vmatprep.subr.bf16.mxu0 0
    %1221 = vmatpush1.bf16.msra.mxu0 0
    %1222 = vmatprep.subr.bf16.mxu0 0
    %1223 = vmatpush1.bf16.msra.mxu0 0
    %1224 = vmatprep.subr.bf16.mxu0 0
    %1225 = vmatpush1.bf16.msra.mxu0 0
    %1226 = vmatprep.subr.bf16.mxu0 0
    %1227 = vmatpush1.bf16.msra.mxu0 0
    %1228 = vmatprep.subr.bf16.mxu0 0
    %1229 = vmatpush1.bf16.msra.mxu0 0
    %1230 = vmatprep.subr.bf16.mxu0 0
    %1231 = vmatpush1.bf16.msra.mxu0 0
    %1232 = vmatprep.subr.bf16.mxu0 0
    %1233 = vmatpush1.bf16.msra.mxu0 0
    %1234 = vmatprep.mubr.bf16.mxu0 0
    %1235 = vmatmul.mubr.bf16.gmra.mrb[0].mxu0 %v1197
    %v1236 = vpop.f32.mrb[0].mxu0
    %v1237 = vadd.f32 0.0, %v1236
    %v1238 = vpop.f32.mrb[0].mxu0
    %v1239 = vpop.f32.mrb[0].mxu0
    %v1240 = vpop.f32.mrb[0].mxu0
    %1241 = vdwg.mxu0
    %1242 = vrot.lane.b32.xlu0 %v397, 104
    %v1243 = vpop.permute.xlu0 %1242
    %v1245 = vsel %vm398, %v1193, 0
    %v1248 = vsel %vm518, %v1243, 0
    %1250 = vmatprep.subr.bf16.mxu0 0
    %1251 = vmatpush1.bf16.msra.mxu0 %v1248
    %1252 = vmatprep.subr.bf16.mxu0 0
    %1253 = vmatpush1.bf16.msra.mxu0 0
    %1254 = vmatprep.subr.bf16.mxu0 0
    %1255 = vmatpush1.bf16.msra.mxu0 0
    %1256 = vmatprep.subr.bf16.mxu0 0
    %1257 = vmatpush1.bf16.msra.mxu0 0
    %1258 = vmatprep.subr.bf16.mxu0 0
    %1259 = vmatpush1.bf16.msra.mxu0 0
    %1260 = vmatprep.subr.bf16.mxu0 0
    %1261 = vmatpush1.bf16.msra.mxu0 0
    %1262 = vmatprep.subr.bf16.mxu0 0
    %1263 = vmatpush1.bf16.msra.mxu0 0
    %1264 = vmatprep.subr.bf16.mxu0 0
    %1265 = vmatpush1.bf16.msra.mxu0 0
    %1266 = vmatprep.subr.bf16.mxu0 0
    %1267 = vmatpush1.bf16.msra.mxu0 0
    %1268 = vmatprep.subr.bf16.mxu0 0
    %1269 = vmatpush1.bf16.msra.mxu0 0
    %1270 = vmatprep.subr.bf16.mxu0 0
    %1271 = vmatpush1.bf16.msra.mxu0 0
    %1272 = vmatprep.subr.bf16.mxu0 0
    %1273 = vmatpush1.bf16.msra.mxu0 0
    %1274 = vmatprep.subr.bf16.mxu0 0
    %1275 = vmatpush1.bf16.msra.mxu0 0
    %1276 = vmatprep.subr.bf16.mxu0 0
    %1277 = vmatpush1.bf16.msra.mxu0 0
    %1278 = vmatprep.subr.bf16.mxu0 0
    %1279 = vmatpush1.bf16.msra.mxu0 0
    %1280 = vmatprep.subr.bf16.mxu0 0
    %1281 = vmatpush1.bf16.msra.mxu0 0
    %1282 = vmatprep.mubr.bf16.mxu0 0
    %1283 = vmatmul.mubr.bf16.gmra.mrb[0].mxu0 %v1245
    %v1284 = vpop.f32.mrb[0].mxu0
    %v1285 = vadd.f32 0.0, %v1284
    %v1286 = vpop.f32.mrb[0].mxu0
    %v1287 = vpop.f32.mrb[0].mxu0
    %v1288 = vpop.f32.mrb[0].mxu0
    %1289 = vdwg.mxu0
    %v1290 = vpack.c.bf16 %v1285, %v1237
    %1292 = vrot.lane.b32.xlu0 %v1290, 24
    %v1293 = vpop.permute.xlu0 %1292
    %vm1295 = vcmask 261312
    %1296 = vst.msk [vmem:[#allocation2] sm:$0xff] %vm1295, %v1293
    %1297 = vrot.lane.b32.xlu0 %v392, 96
    %v1298 = vpop.permute.xlu0 %1297
    %1299 = vrot.lane.b32.xlu0 %v394, 96
    %v1300 = vpop.permute.xlu0 %1299
    %v1302 = vsel %vm398, %v1298, 0
    %v1305 = vsel %vm398, %v1300, 0
    %1307 = vmatprep.subr.bf16.mxu0 0
    %1308 = vmatpush1.bf16.xpose.msra.mxu0 %v1305
    %1309 = vmatprep.subr.bf16.mxu0 0
    %1310 = vmatpush1.bf16.xpose.msra.mxu0 0
    %1311 = vmatprep.subr.bf16.mxu0 0
    %1312 = vmatpush1.bf16.xpose.msra.mxu0 0
    %1313 = vmatprep.subr.bf16.mxu0 0
    %1314 = vmatpush1.bf16.xpose.msra.mxu0 0
    %1315 = vmatprep.subr.bf16.mxu0 0
    %1316 = vmatpush1.bf16.xpose.msra.mxu0 0
    %1317 = vmatprep.subr.bf16.mxu0 0
    %1318 = vmatpush1.bf16.xpose.msra.mxu0 0
    %1319 = vmatprep.subr.bf16.mxu0 0
    %1320 = vmatpush1.bf16.xpose.msra.mxu0 0
    %1321 = vmatprep.subr.bf16.mxu0 0
    %1322 = vmatpush1.bf16.xpose.msra.mxu0 0
    %1323 = vmatprep.subr.bf16.mxu0 0
    %1324 = vmatpush1.bf16.xpose.msra.mxu0 0
    %1325 = vmatprep.subr.bf16.mxu0 0
    %1326 = vmatpush1.bf16.xpose.msra.mxu0 0
    %1327 = vmatprep.subr.bf16.mxu0 0
    %1328 = vmatpush1.bf16.xpose.msra.mxu0 0
    %1329 = vmatprep.subr.bf16.mxu0 0
    %1330 = vmatpush1.bf16.xpose.msra.mxu0 0
    %1331 = vmatprep.subr.bf16.mxu0 0
    %1332 = vmatpush1.bf16.xpose.msra.mxu0 0
    %1333 = vmatprep.subr.bf16.mxu0 0
    %1334 = vmatpush1.bf16.xpose.msra.mxu0 0
    %1335 = vmatprep.subr.bf16.mxu0 0
    %1336 = vmatpush1.bf16.xpose.msra.mxu0 0
    %1337 = vmatprep.subr.bf16.mxu0 0
    %1338 = vmatpush1.bf16.xpose.msra.mxu0 0
    %1339 = vmatprep.mubr.bf16.mxu0 0
    %1340 = vmatmul.mubr.bf16.gmra.mrb[0].mxu0 %v1302
    %v1341 = vpop.f32.mrb[0].mxu0
    %v1342 = vadd.f32 0.0, %v1341
    %v1343 = vpop.f32.mrb[0].mxu0
    %v1344 = vpop.f32.mrb[0].mxu0
    %v1345 = vpop.f32.mrb[0].mxu0
    %1346 = vdwg.mxu0
    %1347 = vrot.lane.b32.xlu0 %v393, 96
    %v1348 = vpop.permute.xlu0 %1347
    %1349 = vrot.lane.b32.xlu0 %v395, 96
    %v1350 = vpop.permute.xlu0 %1349
    %v1352 = vsel %vm398, %v1348, 0
    %v1355 = vsel %vm398, %v1350, 0
    %1357 = vmatprep.subr.bf16.mxu0 0
    %1358 = vmatpush1.bf16.xpose.msra.mxu0 %v1355
    %1359 = vmatprep.subr.bf16.mxu0 0
    %1360 = vmatpush1.bf16.xpose.msra.mxu0 0
    %1361 = vmatprep.subr.bf16.mxu0 0
    %1362 = vmatpush1.bf16.xpose.msra.mxu0 0
    %1363 = vmatprep.subr.bf16.mxu0 0
    %1364 = vmatpush1.bf16.xpose.msra.mxu0 0
    %1365 = vmatprep.subr.bf16.mxu0 0
    %1366 = vmatpush1.bf16.xpose.msra.mxu0 0
    %1367 = vmatprep.subr.bf16.mxu0 0
    %1368 = vmatpush1.bf16.xpose.msra.mxu0 0
    %1369 = vmatprep.subr.bf16.mxu0 0
    %1370 = vmatpush1.bf16.xpose.msra.mxu0 0
    %1371 = vmatprep.subr.bf16.mxu0 0
    %1372 = vmatpush1.bf16.xpose.msra.mxu0 0
    %1373 = vmatprep.subr.bf16.mxu0 0
    %1374 = vmatpush1.bf16.xpose.msra.mxu0 0
    %1375 = vmatprep.subr.bf16.mxu0 0
    %1376 = vmatpush1.bf16.xpose.msra.mxu0 0
    %1377 = vmatprep.subr.bf16.mxu0 0
    %1378 = vmatpush1.bf16.xpose.msra.mxu0 0
    %1379 = vmatprep.subr.bf16.mxu0 0
    %1380 = vmatpush1.bf16.xpose.msra.mxu0 0
    %1381 = vmatprep.subr.bf16.mxu0 0
    %1382 = vmatpush1.bf16.xpose.msra.mxu0 0
    %1383 = vmatprep.subr.bf16.mxu0 0
    %1384 = vmatpush1.bf16.xpose.msra.mxu0 0
    %1385 = vmatprep.subr.bf16.mxu0 0
    %1386 = vmatpush1.bf16.xpose.msra.mxu0 0
    %1387 = vmatprep.subr.bf16.mxu0 0
    %1388 = vmatpush1.bf16.xpose.msra.mxu0 0
    %1389 = vmatprep.mubr.bf16.mxu0 0
    %1390 = vmatmul.mubr.bf16.gmra.mrb[0].mxu0 %v1352
    %v1391 = vpop.f32.mrb[0].mxu0
    %v1392 = vadd.f32 0.0, %v1391
    %v1393 = vpop.f32.mrb[0].mxu0
    %v1394 = vpop.f32.mrb[0].mxu0
    %v1395 = vpop.f32.mrb[0].mxu0
    %1396 = vdwg.mxu0
    %v1397 = vsel %vm398, %v1342, -inf
    %1398 = vmax.xlane.f32.xlu0 %v1397
    %v1399 = vpop.xlane.xlu0 %1398
    %v1400 = vsel %vm398, %v1392, -inf
    %1401 = vmax.xlane.f32.xlu0 %v1400
    %v1402 = vpop.xlane.xlu0 %1401
    %v1403 = vsub.f32 %v1342, %v1399
    %v1404 = vsub.f32 %v1392, %v1402
    %v1405 = vmul.f32 %v1403, 1.442695
    %v1406 = vpow.pop %v1405
    %v1407 = vmul.f32 %v1404, 1.442695
    %v1408 = vpow.pop %v1407
    %v1409 = vsel %vm398, %v1406, 0.0
    %1410 = vadd.xlane.f32.xlu0 %v1409
    %v1411 = vpop.xlane.xlu0 %1410
    %v1412 = vsel %vm398, %v1408, 0.0
    %1413 = vadd.xlane.f32.xlu0 %v1412
    %v1414 = vpop.xlane.xlu0 %1413
    %v1415 = vrcp.pop %v1411
    %v1416 = vrcp.pop %v1414
    %v1417 = vmul.f32 %v1406, %v1415
    %v1418 = vmul.f32 %v1408, %v1416
    %v1419 = vpack.c.bf16 %v1417, %v1417
    %v1420 = vpack.c.bf16 %v1418, %v1418
    %1421 = vrot.lane.b32.xlu0 %v396, 96
    %v1422 = vpop.permute.xlu0 %1421
    %v1424 = vsel %vm398, %v1419, 0
    %v1427 = vsel %vm518, %v1422, 0
    %1429 = vmatprep.subr.bf16.mxu0 0
    %1430 = vmatpush1.bf16.msra.mxu0 %v1427
    %1431 = vmatprep.subr.bf16.mxu0 0
    %1432 = vmatpush1.bf16.msra.mxu0 0
    %1433 = vmatprep.subr.bf16.mxu0 0
    %1434 = vmatpush1.bf16.msra.mxu0 0
    %1435 = vmatprep.subr.bf16.mxu0 0
    %1436 = vmatpush1.bf16.msra.mxu0 0
    %1437 = vmatprep.subr.bf16.mxu0 0
    %1438 = vmatpush1.bf16.msra.mxu0 0
    %1439 = vmatprep.subr.bf16.mxu0 0
    %1440 = vmatpush1.bf16.msra.mxu0 0
    %1441 = vmatprep.subr.bf16.mxu0 0
    %1442 = vmatpush1.bf16.msra.mxu0 0
    %1443 = vmatprep.subr.bf16.mxu0 0
    %1444 = vmatpush1.bf16.msra.mxu0 0
    %1445 = vmatprep.subr.bf16.mxu0 0
    %1446 = vmatpush1.bf16.msra.mxu0 0
    %1447 = vmatprep.subr.bf16.mxu0 0
    %1448 = vmatpush1.bf16.msra.mxu0 0
    %1449 = vmatprep.subr.bf16.mxu0 0
    %1450 = vmatpush1.bf16.msra.mxu0 0
    %1451 = vmatprep.subr.bf16.mxu0 0
    %1452 = vmatpush1.bf16.msra.mxu0 0
    %1453 = vmatprep.subr.bf16.mxu0 0
    %1454 = vmatpush1.bf16.msra.mxu0 0
    %1455 = vmatprep.subr.bf16.mxu0 0
    %1456 = vmatpush1.bf16.msra.mxu0 0
    %1457 = vmatprep.subr.bf16.mxu0 0
    %1458 = vmatpush1.bf16.msra.mxu0 0
    %1459 = vmatprep.subr.bf16.mxu0 0
    %1460 = vmatpush1.bf16.msra.mxu0 0
    %1461 = vmatprep.mubr.bf16.mxu0 0
    %1462 = vmatmul.mubr.bf16.gmra.mrb[0].mxu0 %v1424
    %v1463 = vpop.f32.mrb[0].mxu0
    %v1464 = vadd.f32 0.0, %v1463
    %v1465 = vpop.f32.mrb[0].mxu0
    %v1466 = vpop.f32.mrb[0].mxu0
    %v1467 = vpop.f32.mrb[0].mxu0
    %1468 = vdwg.mxu0
    %1469 = vrot.lane.b32.xlu0 %v397, 96
    %v1470 = vpop.permute.xlu0 %1469
    %v1472 = vsel %vm398, %v1420, 0
    %v1475 = vsel %vm518, %v1470, 0
    %1477 = vmatprep.subr.bf16.mxu0 0
    %1478 = vmatpush1.bf16.msra.mxu0 %v1475
    %1479 = vmatprep.subr.bf16.mxu0 0
    %1480 = vmatpush1.bf16.msra.mxu0 0
    %1481 = vmatprep.subr.bf16.mxu0 0
    %1482 = vmatpush1.bf16.msra.mxu0 0
    %1483 = vmatprep.subr.bf16.mxu0 0
    %1484 = vmatpush1.bf16.msra.mxu0 0
    %1485 = vmatprep.subr.bf16.mxu0 0
    %1486 = vmatpush1.bf16.msra.mxu0 0
    %1487 = vmatprep.subr.bf16.mxu0 0
    %1488 = vmatpush1.bf16.msra.mxu0 0
    %1489 = vmatprep.subr.bf16.mxu0 0
    %1490 = vmatpush1.bf16.msra.mxu0 0
    %1491 = vmatprep.subr.bf16.mxu0 0
    %1492 = vmatpush1.bf16.msra.mxu0 0
    %1493 = vmatprep.subr.bf16.mxu0 0
    %1494 = vmatpush1.bf16.msra.mxu0 0
    %1495 = vmatprep.subr.bf16.mxu0 0
    %1496 = vmatpush1.bf16.msra.mxu0 0
    %1497 = vmatprep.subr.bf16.mxu0 0
    %1498 = vmatpush1.bf16.msra.mxu0 0
    %1499 = vmatprep.subr.bf16.mxu0 0
    %1500 = vmatpush1.bf16.msra.mxu0 0
    %1501 = vmatprep.subr.bf16.mxu0 0
    %1502 = vmatpush1.bf16.msra.mxu0 0
    %1503 = vmatprep.subr.bf16.mxu0 0
    %1504 = vmatpush1.bf16.msra.mxu0 0
    %1505 = vmatprep.subr.bf16.mxu0 0
    %1506 = vmatpush1.bf16.msra.mxu0 0
    %1507 = vmatprep.subr.bf16.mxu0 0
    %1508 = vmatpush1.bf16.msra.mxu0 0
    %1509 = vmatprep.mubr.bf16.mxu0 0
    %1510 = vmatmul.mubr.bf16.gmra.mrb[0].mxu0 %v1472
    %v1511 = vpop.f32.mrb[0].mxu0
    %v1512 = vadd.f32 0.0, %v1511
    %v1513 = vpop.f32.mrb[0].mxu0
    %v1514 = vpop.f32.mrb[0].mxu0
    %v1515 = vpop.f32.mrb[0].mxu0
    %1516 = vdwg.mxu0
    %v1517 = vpack.c.bf16 %v1512, %v1464
    %1519 = vrot.lane.b32.xlu0 %v1517, 32
    %v1520 = vpop.permute.xlu0 %1519
    %vm1522 = vcmask 326912
    %1523 = vst.msk [vmem:[#allocation2] sm:$0xff] %vm1522, %v1520
    %1524 = vrot.lane.b32.xlu0 %v392, 88
    %v1525 = vpop.permute.xlu0 %1524
    %1526 = vrot.lane.b32.xlu0 %v394, 88
    %v1527 = vpop.permute.xlu0 %1526
    %v1529 = vsel %vm398, %v1525, 0
    %v1532 = vsel %vm398, %v1527, 0
    %1534 = vmatprep.subr.bf16.mxu0 0
    %1535 = vmatpush1.bf16.xpose.msra.mxu0 %v1532
    %1536 = vmatprep.subr.bf16.mxu0 0
    %1537 = vmatpush1.bf16.xpose.msra.mxu0 0
    %1538 = vmatprep.subr.bf16.mxu0 0
    %1539 = vmatpush1.bf16.xpose.msra.mxu0 0
    %1540 = vmatprep.subr.bf16.mxu0 0
    %1541 = vmatpush1.bf16.xpose.msra.mxu0 0
    %1542 = vmatprep.subr.bf16.mxu0 0
    %1543 = vmatpush1.bf16.xpose.msra.mxu0 0
    %1544 = vmatprep.subr.bf16.mxu0 0
    %1545 = vmatpush1.bf16.xpose.msra.mxu0 0
    %1546 = vmatprep.subr.bf16.mxu0 0
    %1547 = vmatpush1.bf16.xpose.msra.mxu0 0
    %1548 = vmatprep.subr.bf16.mxu0 0
    %1549 = vmatpush1.bf16.xpose.msra.mxu0 0
    %1550 = vmatprep.subr.bf16.mxu0 0
    %1551 = vmatpush1.bf16.xpose.msra.mxu0 0
    %1552 = vmatprep.subr.bf16.mxu0 0
    %1553 = vmatpush1.bf16.xpose.msra.mxu0 0
    %1554 = vmatprep.subr.bf16.mxu0 0
    %1555 = vmatpush1.bf16.xpose.msra.mxu0 0
    %1556 = vmatprep.subr.bf16.mxu0 0
    %1557 = vmatpush1.bf16.xpose.msra.mxu0 0
    %1558 = vmatprep.subr.bf16.mxu0 0
    %1559 = vmatpush1.bf16.xpose.msra.mxu0 0
    %1560 = vmatprep.subr.bf16.mxu0 0
    %1561 = vmatpush1.bf16.xpose.msra.mxu0 0
    %1562 = vmatprep.subr.bf16.mxu0 0
    %1563 = vmatpush1.bf16.xpose.msra.mxu0 0
    %1564 = vmatprep.subr.bf16.mxu0 0
    %1565 = vmatpush1.bf16.xpose.msra.mxu0 0
    %1566 = vmatprep.mubr.bf16.mxu0 0
    %1567 = vmatmul.mubr.bf16.gmra.mrb[0].mxu0 %v1529
    %v1568 = vpop.f32.mrb[0].mxu0
    %v1569 = vadd.f32 0.0, %v1568
    %v1570 = vpop.f32.mrb[0].mxu0
    %v1571 = vpop.f32.mrb[0].mxu0
    %v1572 = vpop.f32.mrb[0].mxu0
    %1573 = vdwg.mxu0
    %1574 = vrot.lane.b32.xlu0 %v393, 88
    %v1575 = vpop.permute.xlu0 %1574
    %1576 = vrot.lane.b32.xlu0 %v395, 88
    %v1577 = vpop.permute.xlu0 %1576
    %v1579 = vsel %vm398, %v1575, 0
    %v1582 = vsel %vm398, %v1577, 0
    %1584 = vmatprep.subr.bf16.mxu0 0
    %1585 = vmatpush1.bf16.xpose.msra.mxu0 %v1582
    %1586 = vmatprep.subr.bf16.mxu0 0
    %1587 = vmatpush1.bf16.xpose.msra.mxu0 0
    %1588 = vmatprep.subr.bf16.mxu0 0
    %1589 = vmatpush1.bf16.xpose.msra.mxu0 0
    %1590 = vmatprep.subr.bf16.mxu0 0
    %1591 = vmatpush1.bf16.xpose.msra.mxu0 0
    %1592 = vmatprep.subr.bf16.mxu0 0
    %1593 = vmatpush1.bf16.xpose.msra.mxu0 0
    %1594 = vmatprep.subr.bf16.mxu0 0
    %1595 = vmatpush1.bf16.xpose.msra.mxu0 0
    %1596 = vmatprep.subr.bf16.mxu0 0
    %1597 = vmatpush1.bf16.xpose.msra.mxu0 0
    %1598 = vmatprep.subr.bf16.mxu0 0
    %1599 = vmatpush1.bf16.xpose.msra.mxu0 0
    %1600 = vmatprep.subr.bf16.mxu0 0
    %1601 = vmatpush1.bf16.xpose.msra.mxu0 0
    %1602 = vmatprep.subr.bf16.mxu0 0
    %1603 = vmatpush1.bf16.xpose.msra.mxu0 0
    %1604 = vmatprep.subr.bf16.mxu0 0
    %1605 = vmatpush1.bf16.xpose.msra.mxu0 0
    %1606 = vmatprep.subr.bf16.mxu0 0
    %1607 = vmatpush1.bf16.xpose.msra.mxu0 0
    %1608 = vmatprep.subr.bf16.mxu0 0
    %1609 = vmatpush1.bf16.xpose.msra.mxu0 0
    %1610 = vmatprep.subr.bf16.mxu0 0
    %1611 = vmatpush1.bf16.xpose.msra.mxu0 0
    %1612 = vmatprep.subr.bf16.mxu0 0
    %1613 = vmatpush1.bf16.xpose.msra.mxu0 0
    %1614 = vmatprep.subr.bf16.mxu0 0
    %1615 = vmatpush1.bf16.xpose.msra.mxu0 0
    %1616 = vmatprep.mubr.bf16.mxu0 0
    %1617 = vmatmul.mubr.bf16.gmra.mrb[0].mxu0 %v1579
    %v1618 = vpop.f32.mrb[0].mxu0
    %v1619 = vadd.f32 0.0, %v1618
    %v1620 = vpop.f32.mrb[0].mxu0
    %v1621 = vpop.f32.mrb[0].mxu0
    %v1622 = vpop.f32.mrb[0].mxu0
    %1623 = vdwg.mxu0
    %v1624 = vsel %vm398, %v1569, -inf
    %1625 = vmax.xlane.f32.xlu0 %v1624
    %v1626 = vpop.xlane.xlu0 %1625
    %v1627 = vsel %vm398, %v1619, -inf
    %1628 = vmax.xlane.f32.xlu0 %v1627
    %v1629 = vpop.xlane.xlu0 %1628
    %v1630 = vsub.f32 %v1569, %v1626
    %v1631 = vsub.f32 %v1619, %v1629
    %v1632 = vmul.f32 %v1630, 1.442695
    %v1633 = vpow.pop %v1632
    %v1634 = vmul.f32 %v1631, 1.442695
    %v1635 = vpow.pop %v1634
    %v1636 = vsel %vm398, %v1633, 0.0
    %1637 = vadd.xlane.f32.xlu0 %v1636
    %v1638 = vpop.xlane.xlu0 %1637
    %v1639 = vsel %vm398, %v1635, 0.0
    %1640 = vadd.xlane.f32.xlu0 %v1639
    %v1641 = vpop.xlane.xlu0 %1640
    %v1642 = vrcp.pop %v1638
    %v1643 = vrcp.pop %v1641
    %v1644 = vmul.f32 %v1633, %v1642
    %v1645 = vmul.f32 %v1635, %v1643
    %v1646 = vpack.c.bf16 %v1644, %v1644
    %v1647 = vpack.c.bf16 %v1645, %v1645
    %1648 = vrot.lane.b32.xlu0 %v396, 88
    %v1649 = vpop.permute.xlu0 %1648
    %v1651 = vsel %vm398, %v1646, 0
    %v1654 = vsel %vm518, %v1649, 0
    %1656 = vmatprep.subr.bf16.mxu0 0
    %1657 = vmatpush1.bf16.msra.mxu0 %v1654
    %1658 = vmatprep.subr.bf16.mxu0 0
    %1659 = vmatpush1.bf16.msra.mxu0 0
    %1660 = vmatprep.subr.bf16.mxu0 0
    %1661 = vmatpush1.bf16.msra.mxu0 0
    %1662 = vmatprep.subr.bf16.mxu0 0
    %1663 = vmatpush1.bf16.msra.mxu0 0
    %1664 = vmatprep.subr.bf16.mxu0 0
    %1665 = vmatpush1.bf16.msra.mxu0 0
    %1666 = vmatprep.subr.bf16.mxu0 0
    %1667 = vmatpush1.bf16.msra.mxu0 0
    %1668 = vmatprep.subr.bf16.mxu0 0
    %1669 = vmatpush1.bf16.msra.mxu0 0
    %1670 = vmatprep.subr.bf16.mxu0 0
    %1671 = vmatpush1.bf16.msra.mxu0 0
    %1672 = vmatprep.subr.bf16.mxu0 0
    %1673 = vmatpush1.bf16.msra.mxu0 0
    %1674 = vmatprep.subr.bf16.mxu0 0
    %1675 = vmatpush1.bf16.msra.mxu0 0
    %1676 = vmatprep.subr.bf16.mxu0 0
    %1677 = vmatpush1.bf16.msra.mxu0 0
    %1678 = vmatprep.subr.bf16.mxu0 0
    %1679 = vmatpush1.bf16.msra.mxu0 0
    %1680 = vmatprep.subr.bf16.mxu0 0
    %1681 = vmatpush1.bf16.msra.mxu0 0
    %1682 = vmatprep.subr.bf16.mxu0 0
    %1683 = vmatpush1.bf16.msra.mxu0 0
    %1684 = vmatprep.subr.bf16.mxu0 0
    %1685 = vmatpush1.bf16.msra.mxu0 0
    %1686 = vmatprep.subr.bf16.mxu0 0
    %1687 = vmatpush1.bf16.msra.mxu0 0
    %1688 = vmatprep.mubr.bf16.mxu0 0
    %1689 = vmatmul.mubr.bf16.gmra.mrb[0].mxu0 %v1651
    %v1690 = vpop.f32.mrb[0].mxu0
    %v1691 = vadd.f32 0.0, %v1690
    %v1692 = vpop.f32.mrb[0].mxu0
    %v1693 = vpop.f32.mrb[0].mxu0
    %v1694 = vpop.f32.mrb[0].mxu0
    %1695 = vdwg.mxu0
    %1696 = vrot.lane.b32.xlu0 %v397, 88
    %v1697 = vpop.permute.xlu0 %1696
    %v1699 = vsel %vm398, %v1647, 0
    %v1702 = vsel %vm518, %v1697, 0
    %1704 = vmatprep.subr.bf16.mxu0 0
    %1705 = vmatpush1.bf16.msra.mxu0 %v1702
    %1706 = vmatprep.subr.bf16.mxu0 0
    %1707 = vmatpush1.bf16.msra.mxu0 0
    %1708 = vmatprep.subr.bf16.mxu0 0
    %1709 = vmatpush1.bf16.msra.mxu0 0
    %1710 = vmatprep.subr.bf16.mxu0 0
    %1711 = vmatpush1.bf16.msra.mxu0 0
    %1712 = vmatprep.subr.bf16.mxu0 0
    %1713 = vmatpush1.bf16.msra.mxu0 0
    %1714 = vmatprep.subr.bf16.mxu0 0
    %1715 = vmatpush1.bf16.msra.mxu0 0
    %1716 = vmatprep.subr.bf16.mxu0 0
    %1717 = vmatpush1.bf16.msra.mxu0 0
    %1718 = vmatprep.subr.bf16.mxu0 0
    %1719 = vmatpush1.bf16.msra.mxu0 0
    %1720 = vmatprep.subr.bf16.mxu0 0
    %1721 = vmatpush1.bf16.msra.mxu0 0
    %1722 = vmatprep.subr.bf16.mxu0 0
    %1723 = vmatpush1.bf16.msra.mxu0 0
    %1724 = vmatprep.subr.bf16.mxu0 0
    %1725 = vmatpush1.bf16.msra.mxu0 0
    %1726 = vmatprep.subr.bf16.mxu0 0
    %1727 = vmatpush1.bf16.msra.mxu0 0
    %1728 = vmatprep.subr.bf16.mxu0 0
    %1729 = vmatpush1.bf16.msra.mxu0 0
    %1730 = vmatprep.subr.bf16.mxu0 0
    %1731 = vmatpush1.bf16.msra.mxu0 0
    %1732 = vmatprep.subr.bf16.mxu0 0
    %1733 = vmatpush1.bf16.msra.mxu0 0
    %1734 = vmatprep.subr.bf16.mxu0 0
    %1735 = vmatpush1.bf16.msra.mxu0 0
    %1736 = vmatprep.mubr.bf16.mxu0 0
    %1737 = vmatmul.mubr.bf16.gmra.mrb[0].mxu0 %v1699
    %v1738 = vpop.f32.mrb[0].mxu0
    %v1739 = vadd.f32 0.0, %v1738
    %v1740 = vpop.f32.mrb[0].mxu0
    %v1741 = vpop.f32.mrb[0].mxu0
    %v1742 = vpop.f32.mrb[0].mxu0
    %1743 = vdwg.mxu0
    %v1744 = vpack.c.bf16 %v1739, %v1691
    %1746 = vrot.lane.b32.xlu0 %v1744, 40
    %v1747 = vpop.permute.xlu0 %1746
    %vm1749 = vcmask 392512
    %1750 = vst.msk [vmem:[#allocation2] sm:$0xff] %vm1749, %v1747
    %1751 = vrot.lane.b32.xlu0 %v392, 80
    %v1752 = vpop.permute.xlu0 %1751
    %1753 = vrot.lane.b32.xlu0 %v394, 80
    %v1754 = vpop.permute.xlu0 %1753
    %v1756 = vsel %vm398, %v1752, 0
    %v1759 = vsel %vm398, %v1754, 0
    %1761 = vmatprep.subr.bf16.mxu0 0
    %1762 = vmatpush1.bf16.xpose.msra.mxu0 %v1759
    %1763 = vmatprep.subr.bf16.mxu0 0
    %1764 = vmatpush1.bf16.xpose.msra.mxu0 0
    %1765 = vmatprep.subr.bf16.mxu0 0
    %1766 = vmatpush1.bf16.xpose.msra.mxu0 0
    %1767 = vmatprep.subr.bf16.mxu0 0
    %1768 = vmatpush1.bf16.xpose.msra.mxu0 0
    %1769 = vmatprep.subr.bf16.mxu0 0
    %1770 = vmatpush1.bf16.xpose.msra.mxu0 0
    %1771 = vmatprep.subr.bf16.mxu0 0
    %1772 = vmatpush1.bf16.xpose.msra.mxu0 0
    %1773 = vmatprep.subr.bf16.mxu0 0
    %1774 = vmatpush1.bf16.xpose.msra.mxu0 0
    %1775 = vmatprep.subr.bf16.mxu0 0
    %1776 = vmatpush1.bf16.xpose.msra.mxu0 0
    %1777 = vmatprep.subr.bf16.mxu0 0
    %1778 = vmatpush1.bf16.xpose.msra.mxu0 0
    %1779 = vmatprep.subr.bf16.mxu0 0
    %1780 = vmatpush1.bf16.xpose.msra.mxu0 0
    %1781 = vmatprep.subr.bf16.mxu0 0
    %1782 = vmatpush1.bf16.xpose.msra.mxu0 0
    %1783 = vmatprep.subr.bf16.mxu0 0
    %1784 = vmatpush1.bf16.xpose.msra.mxu0 0
    %1785 = vmatprep.subr.bf16.mxu0 0
    %1786 = vmatpush1.bf16.xpose.msra.mxu0 0
    %1787 = vmatprep.subr.bf16.mxu0 0
    %1788 = vmatpush1.bf16.xpose.msra.mxu0 0
    %1789 = vmatprep.subr.bf16.mxu0 0
    %1790 = vmatpush1.bf16.xpose.msra.mxu0 0
    %1791 = vmatprep.subr.bf16.mxu0 0
    %1792 = vmatpush1.bf16.xpose.msra.mxu0 0
    %1793 = vmatprep.mubr.bf16.mxu0 0
    %1794 = vmatmul.mubr.bf16.gmra.mrb[0].mxu0 %v1756
    %v1795 = vpop.f32.mrb[0].mxu0
    %v1796 = vadd.f32 0.0, %v1795
    %v1797 = vpop.f32.mrb[0].mxu0
    %v1798 = vpop.f32.mrb[0].mxu0
    %v1799 = vpop.f32.mrb[0].mxu0
    %1800 = vdwg.mxu0
    %1801 = vrot.lane.b32.xlu0 %v393, 80
    %v1802 = vpop.permute.xlu0 %1801
    %1803 = vrot.lane.b32.xlu0 %v395, 80
    %v1804 = vpop.permute.xlu0 %1803
    %v1806 = vsel %vm398, %v1802, 0
    %v1809 = vsel %vm398, %v1804, 0
    %1811 = vmatprep.subr.bf16.mxu0 0
    %1812 = vmatpush1.bf16.xpose.msra.mxu0 %v1809
    %1813 = vmatprep.subr.bf16.mxu0 0
    %1814 = vmatpush1.bf16.xpose.msra.mxu0 0
    %1815 = vmatprep.subr.bf16.mxu0 0
    %1816 = vmatpush1.bf16.xpose.msra.mxu0 0
    %1817 = vmatprep.subr.bf16.mxu0 0
    %1818 = vmatpush1.bf16.xpose.msra.mxu0 0
    %1819 = vmatprep.subr.bf16.mxu0 0
    %1820 = vmatpush1.bf16.xpose.msra.mxu0 0
    %1821 = vmatprep.subr.bf16.mxu0 0
    %1822 = vmatpush1.bf16.xpose.msra.mxu0 0
    %1823 = vmatprep.subr.bf16.mxu0 0
    %1824 = vmatpush1.bf16.xpose.msra.mxu0 0
    %1825 = vmatprep.subr.bf16.mxu0 0
    %1826 = vmatpush1.bf16.xpose.msra.mxu0 0
    %1827 = vmatprep.subr.bf16.mxu0 0
    %1828 = vmatpush1.bf16.xpose.msra.mxu0 0
    %1829 = vmatprep.subr.bf16.mxu0 0
    %1830 = vmatpush1.bf16.xpose.msra.mxu0 0
    %1831 = vmatprep.subr.bf16.mxu0 0
    %1832 = vmatpush1.bf16.xpose.msra.mxu0 0
    %1833 = vmatprep.subr.bf16.mxu0 0
    %1834 = vmatpush1.bf16.xpose.msra.mxu0 0
    %1835 = vmatprep.subr.bf16.mxu0 0
    %1836 = vmatpush1.bf16.xpose.msra.mxu0 0
    %1837 = vmatprep.subr.bf16.mxu0 0
    %1838 = vmatpush1.bf16.xpose.msra.mxu0 0
    %1839 = vmatprep.subr.bf16.mxu0 0
    %1840 = vmatpush1.bf16.xpose.msra.mxu0 0
    %1841 = vmatprep.subr.bf16.mxu0 0
    %1842 = vmatpush1.bf16.xpose.msra.mxu0 0
    %1843 = vmatprep.mubr.bf16.mxu0 0
    %1844 = vmatmul.mubr.bf16.gmra.mrb[0].mxu0 %v1806
    %v1845 = vpop.f32.mrb[0].mxu0
    %v1846 = vadd.f32 0.0, %v1845
    %v1847 = vpop.f32.mrb[0].mxu0
    %v1848 = vpop.f32.mrb[0].mxu0
    %v1849 = vpop.f32.mrb[0].mxu0
    %1850 = vdwg.mxu0
    %v1851 = vsel %vm398, %v1796, -inf
    %1852 = vmax.xlane.f32.xlu0 %v1851
    %v1853 = vpop.xlane.xlu0 %1852
    %v1854 = vsel %vm398, %v1846, -inf
    %1855 = vmax.xlane.f32.xlu0 %v1854
    %v1856 = vpop.xlane.xlu0 %1855
    %v1857 = vsub.f32 %v1796, %v1853
    %v1858 = vsub.f32 %v1846, %v1856
    %v1859 = vmul.f32 %v1857, 1.442695
    %v1860 = vpow.pop %v1859
    %v1861 = vmul.f32 %v1858, 1.442695
    %v1862 = vpow.pop %v1861
    %v1863 = vsel %vm398, %v1860, 0.0
    %1864 = vadd.xlane.f32.xlu0 %v1863
    %v1865 = vpop.xlane.xlu0 %1864
    %v1866 = vsel %vm398, %v1862, 0.0
    %1867 = vadd.xlane.f32.xlu0 %v1866
    %v1868 = vpop.xlane.xlu0 %1867
    %v1869 = vrcp.pop %v1865
    %v1870 = vrcp.pop %v1868
    %v1871 = vmul.f32 %v1860, %v1869
    %v1872 = vmul.f32 %v1862, %v1870
    %v1873 = vpack.c.bf16 %v1871, %v1871
    %v1874 = vpack.c.bf16 %v1872, %v1872
    %1875 = vrot.lane.b32.xlu0 %v396, 80
    %v1876 = vpop.permute.xlu0 %1875
    %v1878 = vsel %vm398, %v1873, 0
    %v1881 = vsel %vm518, %v1876, 0
    %1883 = vmatprep.subr.bf16.mxu0 0
    %1884 = vmatpush1.bf16.msra.mxu0 %v1881
    %1885 = vmatprep.subr.bf16.mxu0 0
    %1886 = vmatpush1.bf16.msra.mxu0 0
    %1887 = vmatprep.subr.bf16.mxu0 0
    %1888 = vmatpush1.bf16.msra.mxu0 0
    %1889 = vmatprep.subr.bf16.mxu0 0
    %1890 = vmatpush1.bf16.msra.mxu0 0
    %1891 = vmatprep.subr.bf16.mxu0 0
    %1892 = vmatpush1.bf16.msra.mxu0 0
    %1893 = vmatprep.subr.bf16.mxu0 0
    %1894 = vmatpush1.bf16.msra.mxu0 0
    %1895 = vmatprep.subr.bf16.mxu0 0
    %1896 = vmatpush1.bf16.msra.mxu0 0
    %1897 = vmatprep.subr.bf16.mxu0 0
    %1898 = vmatpush1.bf16.msra.mxu0 0
    %1899 = vmatprep.subr.bf16.mxu0 0
    %1900 = vmatpush1.bf16.msra.mxu0 0
    %1901 = vmatprep.subr.bf16.mxu0 0
    %1902 = vmatpush1.bf16.msra.mxu0 0
    %1903 = vmatprep.subr.bf16.mxu0 0
    %1904 = vmatpush1.bf16.msra.mxu0 0
    %1905 = vmatprep.subr.bf16.mxu0 0
    %1906 = vmatpush1.bf16.msra.mxu0 0
    %1907 = vmatprep.subr.bf16.mxu0 0
    %1908 = vmatpush1.bf16.msra.mxu0 0
    %1909 = vmatprep.subr.bf16.mxu0 0
    %1910 = vmatpush1.bf16.msra.mxu0 0
    %1911 = vmatprep.subr.bf16.mxu0 0
    %1912 = vmatpush1.bf16.msra.mxu0 0
    %1913 = vmatprep.subr.bf16.mxu0 0
    %1914 = vmatpush1.bf16.msra.mxu0 0
    %1915 = vmatprep.mubr.bf16.mxu0 0
    %1916 = vmatmul.mubr.bf16.gmra.mrb[0].mxu0 %v1878
    %v1917 = vpop.f32.mrb[0].mxu0
    %v1918 = vadd.f32 0.0, %v1917
    %v1919 = vpop.f32.mrb[0].mxu0
    %v1920 = vpop.f32.mrb[0].mxu0
    %v1921 = vpop.f32.mrb[0].mxu0
    %1922 = vdwg.mxu0
    %1923 = vrot.lane.b32.xlu0 %v397, 80
    %v1924 = vpop.permute.xlu0 %1923
    %v1926 = vsel %vm398, %v1874, 0
    %v1929 = vsel %vm518, %v1924, 0
    %1931 = vmatprep.subr.bf16.mxu0 0
    %1932 = vmatpush1.bf16.msra.mxu0 %v1929
    %1933 = vmatprep.subr.bf16.mxu0 0
    %1934 = vmatpush1.bf16.msra.mxu0 0
    %1935 = vmatprep.subr.bf16.mxu0 0
    %1936 = vmatpush1.bf16.msra.mxu0 0
    %1937 = vmatprep.subr.bf16.mxu0 0
    %1938 = vmatpush1.bf16.msra.mxu0 0
    %1939 = vmatprep.subr.bf16.mxu0 0
    %1940 = vmatpush1.bf16.msra.mxu0 0
    %1941 = vmatprep.subr.bf16.mxu0 0
    %1942 = vmatpush1.bf16.msra.mxu0 0
    %1943 = vmatprep.subr.bf16.mxu0 0
    %1944 = vmatpush1.bf16.msra.mxu0 0
    %1945 = vmatprep.subr.bf16.mxu0 0
    %1946 = vmatpush1.bf16.msra.mxu0 0
    %1947 = vmatprep.subr.bf16.mxu0 0
    %1948 = vmatpush1.bf16.msra.mxu0 0
    %1949 = vmatprep.subr.bf16.mxu0 0
    %1950 = vmatpush1.bf16.msra.mxu0 0
    %1951 = vmatprep.subr.bf16.mxu0 0
    %1952 = vmatpush1.bf16.msra.mxu0 0
    %1953 = vmatprep.subr.bf16.mxu0 0
    %1954 = vmatpush1.bf16.msra.mxu0 0
    %1955 = vmatprep.subr.bf16.mxu0 0
    %1956 = vmatpush1.bf16.msra.mxu0 0
    %1957 = vmatprep.subr.bf16.mxu0 0
    %1958 = vmatpush1.bf16.msra.mxu0 0
    %1959 = vmatprep.subr.bf16.mxu0 0
    %1960 = vmatpush1.bf16.msra.mxu0 0
    %1961 = vmatprep.subr.bf16.mxu0 0
    %1962 = vmatpush1.bf16.msra.mxu0 0
    %1963 = vmatprep.mubr.bf16.mxu0 0
    %1964 = vmatmul.mubr.bf16.gmra.mrb[0].mxu0 %v1926
    %v1965 = vpop.f32.mrb[0].mxu0
    %v1966 = vadd.f32 0.0, %v1965
    %v1967 = vpop.f32.mrb[0].mxu0
    %v1968 = vpop.f32.mrb[0].mxu0
    %v1969 = vpop.f32.mrb[0].mxu0
    %1970 = vdwg.mxu0
    %v1971 = vpack.c.bf16 %v1966, %v1918
    %1973 = vrot.lane.b32.xlu0 %v1971, 48
    %v1974 = vpop.permute.xlu0 %1973
    %vm1976 = vcmask 458112
    %1977 = vst.msk [vmem:[#allocation2] sm:$0xff] %vm1976, %v1974
    %1978 = vrot.lane.b32.xlu0 %v392, 72
    %v1979 = vpop.permute.xlu0 %1978
    %1980 = vrot.lane.b32.xlu0 %v394, 72
    %v1981 = vpop.permute.xlu0 %1980
    %v1983 = vsel %vm398, %v1979, 0
    %v1986 = vsel %vm398, %v1981, 0
    %1988 = vmatprep.subr.bf16.mxu0 0
    %1989 = vmatpush1.bf16.xpose.msra.mxu0 %v1986
    %1990 = vmatprep.subr.bf16.mxu0 0
    %1991 = vmatpush1.bf16.xpose.msra.mxu0 0
    %1992 = vmatprep.subr.bf16.mxu0 0
    %1993 = vmatpush1.bf16.xpose.msra.mxu0 0
    %1994 = vmatprep.subr.bf16.mxu0 0
    %1995 = vmatpush1.bf16.xpose.msra.mxu0 0
    %1996 = vmatprep.subr.bf16.mxu0 0
    %1997 = vmatpush1.bf16.xpose.msra.mxu0 0
    %1998 = vmatprep.subr.bf16.mxu0 0
    %1999 = vmatpush1.bf16.xpose.msra.mxu0 0
    %2000 = vmatprep.subr.bf16.mxu0 0
    %2001 = vmatpush1.bf16.xpose.msra.mxu0 0
    %2002 = vmatprep.subr.bf16.mxu0 0
    %2003 = vmatpush1.bf16.xpose.msra.mxu0 0
    %2004 = vmatprep.subr.bf16.mxu0 0
    %2005 = vmatpush1.bf16.xpose.msra.mxu0 0
    %2006 = vmatprep.subr.bf16.mxu0 0
    %2007 = vmatpush1.bf16.xpose.msra.mxu0 0
    %2008 = vmatprep.subr.bf16.mxu0 0
    %2009 = vmatpush1.bf16.xpose.msra.mxu0 0
    %2010 = vmatprep.subr.bf16.mxu0 0
    %2011 = vmatpush1.bf16.xpose.msra.mxu0 0
    %2012 = vmatprep.subr.bf16.mxu0 0
    %2013 = vmatpush1.bf16.xpose.msra.mxu0 0
    %2014 = vmatprep.subr.bf16.mxu0 0
    %2015 = vmatpush1.bf16.xpose.msra.mxu0 0
    %2016 = vmatprep.subr.bf16.mxu0 0
    %2017 = vmatpush1.bf16.xpose.msra.mxu0 0
    %2018 = vmatprep.subr.bf16.mxu0 0
    %2019 = vmatpush1.bf16.xpose.msra.mxu0 0
    %2020 = vmatprep.mubr.bf16.mxu0 0
    %2021 = vmatmul.mubr.bf16.gmra.mrb[0].mxu0 %v1983
    %v2022 = vpop.f32.mrb[0].mxu0
    %v2023 = vadd.f32 0.0, %v2022
    %v2024 = vpop.f32.mrb[0].mxu0
    %v2025 = vpop.f32.mrb[0].mxu0
    %v2026 = vpop.f32.mrb[0].mxu0
    %2027 = vdwg.mxu0
    %2028 = vrot.lane.b32.xlu0 %v393, 72
    %v2029 = vpop.permute.xlu0 %2028
    %2030 = vrot.lane.b32.xlu0 %v395, 72
    %v2031 = vpop.permute.xlu0 %2030
    %v2033 = vsel %vm398, %v2029, 0
    %v2036 = vsel %vm398, %v2031, 0
    %2038 = vmatprep.subr.bf16.mxu0 0
    %2039 = vmatpush1.bf16.xpose.msra.mxu0 %v2036
    %2040 = vmatprep.subr.bf16.mxu0 0
    %2041 = vmatpush1.bf16.xpose.msra.mxu0 0
    %2042 = vmatprep.subr.bf16.mxu0 0
    %2043 = vmatpush1.bf16.xpose.msra.mxu0 0
    %2044 = vmatprep.subr.bf16.mxu0 0
    %2045 = vmatpush1.bf16.xpose.msra.mxu0 0
    %2046 = vmatprep.subr.bf16.mxu0 0
    %2047 = vmatpush1.bf16.xpose.msra.mxu0 0
    %2048 = vmatprep.subr.bf16.mxu0 0
    %2049 = vmatpush1.bf16.xpose.msra.mxu0 0
    %2050 = vmatprep.subr.bf16.mxu0 0
    %2051 = vmatpush1.bf16.xpose.msra.mxu0 0
    %2052 = vmatprep.subr.bf16.mxu0 0
    %2053 = vmatpush1.bf16.xpose.msra.mxu0 0
    %2054 = vmatprep.subr.bf16.mxu0 0
    %2055 = vmatpush1.bf16.xpose.msra.mxu0 0
    %2056 = vmatprep.subr.bf16.mxu0 0
    %2057 = vmatpush1.bf16.xpose.msra.mxu0 0
    %2058 = vmatprep.subr.bf16.mxu0 0
    %2059 = vmatpush1.bf16.xpose.msra.mxu0 0
    %2060 = vmatprep.subr.bf16.mxu0 0
    %2061 = vmatpush1.bf16.xpose.msra.mxu0 0
    %2062 = vmatprep.subr.bf16.mxu0 0
    %2063 = vmatpush1.bf16.xpose.msra.mxu0 0
    %2064 = vmatprep.subr.bf16.mxu0 0
    %2065 = vmatpush1.bf16.xpose.msra.mxu0 0
    %2066 = vmatprep.subr.bf16.mxu0 0
    %2067 = vmatpush1.bf16.xpose.msra.mxu0 0
    %2068 = vmatprep.subr.bf16.mxu0 0
    %2069 = vmatpush1.bf16.xpose.msra.mxu0 0
    %2070 = vmatprep.mubr.bf16.mxu0 0
    %2071 = vmatmul.mubr.bf16.gmra.mrb[0].mxu0 %v2033
    %v2072 = vpop.f32.mrb[0].mxu0
    %v2073 = vadd.f32 0.0, %v2072
    %v2074 = vpop.f32.mrb[0].mxu0
    %v2075 = vpop.f32.mrb[0].mxu0
    %v2076 = vpop.f32.mrb[0].mxu0
    %2077 = vdwg.mxu0
    %v2078 = vsel %vm398, %v2023, -inf
    %2079 = vmax.xlane.f32.xlu0 %v2078
    %v2080 = vpop.xlane.xlu0 %2079
    %v2081 = vsel %vm398, %v2073, -inf
    %2082 = vmax.xlane.f32.xlu0 %v2081
    %v2083 = vpop.xlane.xlu0 %2082
    %v2084 = vsub.f32 %v2023, %v2080
    %v2085 = vsub.f32 %v2073, %v2083
    %v2086 = vmul.f32 %v2084, 1.442695
    %v2087 = vpow.pop %v2086
    %v2088 = vmul.f32 %v2085, 1.442695
    %v2089 = vpow.pop %v2088
    %v2090 = vsel %vm398, %v2087, 0.0
    %2091 = vadd.xlane.f32.xlu0 %v2090
    %v2092 = vpop.xlane.xlu0 %2091
    %v2093 = vsel %vm398, %v2089, 0.0
    %2094 = vadd.xlane.f32.xlu0 %v2093
    %v2095 = vpop.xlane.xlu0 %2094
    %v2096 = vrcp.pop %v2092
    %v2097 = vrcp.pop %v2095
    %v2098 = vmul.f32 %v2087, %v2096
    %v2099 = vmul.f32 %v2089, %v2097
    %v2100 = vpack.c.bf16 %v2098, %v2098
    %v2101 = vpack.c.bf16 %v2099, %v2099
    %2102 = vrot.lane.b32.xlu0 %v396, 72
    %v2103 = vpop.permute.xlu0 %2102
    %v2105 = vsel %vm398, %v2100, 0
    %v2108 = vsel %vm518, %v2103, 0
    %2110 = vmatprep.subr.bf16.mxu0 0
    %2111 = vmatpush1.bf16.msra.mxu0 %v2108
    %2112 = vmatprep.subr.bf16.mxu0 0
    %2113 = vmatpush1.bf16.msra.mxu0 0
    %2114 = vmatprep.subr.bf16.mxu0 0
    %2115 = vmatpush1.bf16.msra.mxu0 0
    %2116 = vmatprep.subr.bf16.mxu0 0
    %2117 = vmatpush1.bf16.msra.mxu0 0
    %2118 = vmatprep.subr.bf16.mxu0 0
    %2119 = vmatpush1.bf16.msra.mxu0 0
    %2120 = vmatprep.subr.bf16.mxu0 0
    %2121 = vmatpush1.bf16.msra.mxu0 0
    %2122 = vmatprep.subr.bf16.mxu0 0
    %2123 = vmatpush1.bf16.msra.mxu0 0
    %2124 = vmatprep.subr.bf16.mxu0 0
    %2125 = vmatpush1.bf16.msra.mxu0 0
    %2126 = vmatprep.subr.bf16.mxu0 0
    %2127 = vmatpush1.bf16.msra.mxu0 0
    %2128 = vmatprep.subr.bf16.mxu0 0
    %2129 = vmatpush1.bf16.msra.mxu0 0
    %2130 = vmatprep.subr.bf16.mxu0 0
    %2131 = vmatpush1.bf16.msra.mxu0 0
    %2132 = vmatprep.subr.bf16.mxu0 0
    %2133 = vmatpush1.bf16.msra.mxu0 0
    %2134 = vmatprep.subr.bf16.mxu0 0
    %2135 = vmatpush1.bf16.msra.mxu0 0
    %2136 = vmatprep.subr.bf16.mxu0 0
    %2137 = vmatpush1.bf16.msra.mxu0 0
    %2138 = vmatprep.subr.bf16.mxu0 0
    %2139 = vmatpush1.bf16.msra.mxu0 0
    %2140 = vmatprep.subr.bf16.mxu0 0
    %2141 = vmatpush1.bf16.msra.mxu0 0
    %2142 = vmatprep.mubr.bf16.mxu0 0
    %2143 = vmatmul.mubr.bf16.gmra.mrb[0].mxu0 %v2105
    %v2144 = vpop.f32.mrb[0].mxu0
    %v2145 = vadd.f32 0.0, %v2144
    %v2146 = vpop.f32.mrb[0].mxu0
    %v2147 = vpop.f32.mrb[0].mxu0
    %v2148 = vpop.f32.mrb[0].mxu0
    %2149 = vdwg.mxu0
    %2150 = vrot.lane.b32.xlu0 %v397, 72
    %v2151 = vpop.permute.xlu0 %2150
    %v2153 = vsel %vm398, %v2101, 0
    %v2156 = vsel %vm518, %v2151, 0
    %2158 = vmatprep.subr.bf16.mxu0 0
    %2159 = vmatpush1.bf16.msra.mxu0 %v2156
    %2160 = vmatprep.subr.bf16.mxu0 0
    %2161 = vmatpush1.bf16.msra.mxu0 0
    %2162 = vmatprep.subr.bf16.mxu0 0
    %2163 = vmatpush1.bf16.msra.mxu0 0
    %2164 = vmatprep.subr.bf16.mxu0 0
    %2165 = vmatpush1.bf16.msra.mxu0 0
    %2166 = vmatprep.subr.bf16.mxu0 0
    %2167 = vmatpush1.bf16.msra.mxu0 0
    %2168 = vmatprep.subr.bf16.mxu0 0
    %2169 = vmatpush1.bf16.msra.mxu0 0
    %2170 = vmatprep.subr.bf16.mxu0 0
    %2171 = vmatpush1.bf16.msra.mxu0 0
    %2172 = vmatprep.subr.bf16.mxu0 0
    %2173 = vmatpush1.bf16.msra.mxu0 0
    %2174 = vmatprep.subr.bf16.mxu0 0
    %2175 = vmatpush1.bf16.msra.mxu0 0
    %2176 = vmatprep.subr.bf16.mxu0 0
    %2177 = vmatpush1.bf16.msra.mxu0 0
    %2178 = vmatprep.subr.bf16.mxu0 0
    %2179 = vmatpush1.bf16.msra.mxu0 0
    %2180 = vmatprep.subr.bf16.mxu0 0
    %2181 = vmatpush1.bf16.msra.mxu0 0
    %2182 = vmatprep.subr.bf16.mxu0 0
    %2183 = vmatpush1.bf16.msra.mxu0 0
    %2184 = vmatprep.subr.bf16.mxu0 0
    %2185 = vmatpush1.bf16.msra.mxu0 0
    %2186 = vmatprep.subr.bf16.mxu0 0
    %2187 = vmatpush1.bf16.msra.mxu0 0
    %2188 = vmatprep.subr.bf16.mxu0 0
    %2189 = vmatpush1.bf16.msra.mxu0 0
    %2190 = vmatprep.mubr.bf16.mxu0 0
    %2191 = vmatmul.mubr.bf16.gmra.mrb[0].mxu0 %v2153
    %v2192 = vpop.f32.mrb[0].mxu0
    %v2193 = vadd.f32 0.0, %v2192
    %v2194 = vpop.f32.mrb[0].mxu0
    %v2195 = vpop.f32.mrb[0].mxu0
    %v2196 = vpop.f32.mrb[0].mxu0
    %2197 = vdwg.mxu0
    %v2198 = vpack.c.bf16 %v2193, %v2145
    %2200 = vrot.lane.b32.xlu0 %v2198, 56
    %v2201 = vpop.permute.xlu0 %2200
    %vm2203 = vcmask 523712
    %2204 = vst.msk [vmem:[#allocation2] sm:$0xff] %vm2203, %v2201
    %v2205 = vld [vmem:[#allocation2] sm:$0xff]
    %v2206 = vld [vmem:[%s9] sm:$0xf]
    %v2207 = vld [vmem:[%s9 + $0x4] sm:$0xf]
    %v2208 = vld [vmem:[%s9 + $0x8] sm:$0xf]
    %v2209 = vld [vmem:[%s9 + $0xc] sm:$0xf]
    %v2210 = vld [vmem:[%s9 + $0x10] sm:$0xf]
    %v2211 = vld [vmem:[%s9 + $0x14] sm:$0xf]
    %v2212 = vld [vmem:[%s9 + $0x18] sm:$0xf]
    %v2213 = vld [vmem:[%s9 + $0x1c] sm:$0xf]
    %v2214 = vld [vmem:[%s10] sm:$0x1]
    %v2216 = vlaneseq
    %v2217 = vshrl.u32 %v2216, 7
    %v2218 = vsub.s32 0, %v2217
    %v2219 = vrot.slane %v2214, %v2218
    %v2229 = vunpack.c.l.b16 %v2206
    %v2230 = vunpack.c.l.b16 %v2207
    %v2231 = vunpack.c.l.b16 %v2208
    %v2232 = vunpack.c.l.b16 %v2209
    %v2233 = vunpack.c.l.b16 %v2210
    %v2234 = vunpack.c.l.b16 %v2211
    %v2235 = vunpack.c.l.b16 %v2212
    %v2236 = vunpack.c.l.b16 %v2213
    %v2237 = vpack.c.b16 %v2230, %v2229
    %v2238 = vpack.c.b16 %v2232, %v2231
    %v2239 = vpack.c.b16 %v2234, %v2233
    %v2240 = vpack.c.b16 %v2236, %v2235
    %v2246 = vsel %vm181, %v2205, 0
    %2248 = vmatprep.subr.bf16.mxu0 0
    %2249 = vmatpush1.bf16.msra.mxu0 %v2237
    %2250 = vmatprep.subr.bf16.mxu0 0
    %2251 = vmatpush1.bf16.msra.mxu0 %v2238
    %2252 = vmatprep.subr.bf16.mxu0 0
    %2253 = vmatpush1.bf16.msra.mxu0 %v2239
    %2254 = vmatprep.subr.bf16.mxu0 0
    %2255 = vmatpush1.bf16.msra.mxu0 %v2240
    %2256 = vmatprep.subr.bf16.mxu0 0
    %2257 = vmatpush1.bf16.msra.mxu0 0
    %2258 = vmatprep.subr.bf16.mxu0 0
    %2259 = vmatpush1.bf16.msra.mxu0 0
    %2260 = vmatprep.subr.bf16.mxu0 0
    %2261 = vmatpush1.bf16.msra.mxu0 0
    %2262 = vmatprep.subr.bf16.mxu0 0
    %2263 = vmatpush1.bf16.msra.mxu0 0
    %2264 = vmatprep.subr.bf16.mxu0 0
    %2265 = vmatpush1.bf16.msra.mxu0 0
    %2266 = vmatprep.subr.bf16.mxu0 0
    %2267 = vmatpush1.bf16.msra.mxu0 0
    %2268 = vmatprep.subr.bf16.mxu0 0
    %2269 = vmatpush1.bf16.msra.mxu0 0
    %2270 = vmatprep.subr.bf16.mxu0 0
    %2271 = vmatpush1.bf16.msra.mxu0 0
    %2272 = vmatprep.subr.bf16.mxu0 0
    %2273 = vmatpush1.bf16.msra.mxu0 0
    %2274 = vmatprep.subr.bf16.mxu0 0
    %2275 = vmatpush1.bf16.msra.mxu0 0
    %2276 = vmatprep.subr.bf16.mxu0 0
    %2277 = vmatpush1.bf16.msra.mxu0 0
    %2278 = vmatprep.subr.bf16.mxu0 0
    %2279 = vmatpush1.bf16.msra.mxu0 0
    %2280 = vmatprep.mubr.bf16.mxu0 0
    %2281 = vmatmul.mubr.bf16.gmra.mrb[0].mxu0 %v2246
    %v2282 = vpop.f32.mrb[0].mxu0
    %v2283 = vadd.f32 %v2219, %v2282
    %v2284 = vpop.f32.mrb[0].mxu0
    %v2285 = vpop.f32.mrb[0].mxu0
    %v2286 = vadd.f32 %v2219, %v2285
    %v2287 = vpop.f32.mrb[0].mxu0
    %2288 = vdwg.mxu0
    %v2289 = vtanh.pop %v2283
    %v2290 = vtanh.pop %v2286
    %2291 = vst.msk [vmem:[#allocation15] sm:$0xff] %vm181, %v2289
    %2292 = vst.msk [vmem:[#allocation15 + $0x8] sm:$0xff] %vm181, %v2290
    // Predicated region
    $region74: #{tpu_custom_call.1} parent=1 // pred_check
      _
    $region75: #{tpu_custom_call.1} parent=1 // pred_check_branch
      %2294 = sbr.rel (0) target = $region77
    $region76: #{tpu_custom_call.1} parent=1 // pred_region
      %s2296 = ssub.s32 256, 256
      %2297 = vsyncadd [#allocation5], %s2296
      %s2298 = sshll.u32 [#allocation15], 4
      %s2299 = int_to_ptr.vmem [resolvable:$true] %s2298
      %2304 = dma.vmem_to_hbm [thread:$0]  %s2299, 256, %s11, [#allocation5], 128, 128, 8
    $region77: #{tpu_custom_call.1} parent=1 // pred_fallthru
      _
    // Predicated region
    $region78: #{tpu_custom_call.1} parent=1 // pred_check
      _
    $region79: #{tpu_custom_call.1} parent=1 // pred_check_branch
      %2306 = sbr.rel (0) target = $region81
    $region80: #{tpu_custom_call.1} parent=1 // pred_region
      %2307 = dma.done [#allocation5], 256
    $region81: #{tpu_custom_call.1} parent=1 // pred_fallthru
      _
    %2308 = vsyncpa [#allocation4], 1
    %2309 = vsyncpa [#allocation7], 1
    %2310 = vsyncpa [#allocation10], 1
    %2311 = vsyncpa [#allocation13], 1
    %2312 = vsyncpa [#allocation5], 1

</llo_original>
